<compile_context>
chip_gen: v5e
topology: v5e:2x2
jax: 0.10.0
libtpu: 0.0.40
codegen_flags: <defaults>
</compile_context>

<pallas_src>
import jax
import jax.numpy as jnp
from jax import lax
from jax.experimental import pallas as pl
from jax.experimental.pallas import tpu as pltpu

IN_CH = 4          # in_channels
THETA_CH = 100     # theta / phi output channels (module spec)
G_CH = 200         # g output channels (module spec)
KSIZE = 7          # 7x7 conv kernel

THETA_P = 128      # theta/phi channels padded to a lane multiple
G_P = 256          # g channels padded to a lane multiple
FUSED_OUT = 2 * THETA_P + G_P   # 512 = theta | phi | g, all zero-padded

# Above the 16 MiB (v5e) / 32 MiB (v6e, v7x) default scoped limits, below the
# 64 MiB physical VMEM of v7x (with headroom).
VMEM_LIMIT_BYTES = 48 * 1024 * 1024


def _round_up(x, m):
    return ((x + m - 1) // m) * m


def _pick_tile_m(rows):
    """Row tile for the fused conv matmul: big (<=1024), but >=2 grid steps."""
    t = 1024
    while t > 128 and t > _round_up(max(rows // 2, 1), 128):
        t //= 2
    return t


def _pick_tile_n(n, m):
    """Query-row tile for attention: <=512, bound the (t, m) score block."""
    t = 512
    while t > 128 and (t > _round_up(max(n // 2, 1), 128)
                       or t * m * 6 > (8 << 20)):
        t //= 2
    return t


# ---------------------------------------------------------------------------
# Pallas kernels
# ---------------------------------------------------------------------------
def _fused_conv_kernel(x_ref, w_ref, o_ref):
    # x: (TILE_M, K_pad) bf16, w: (K_pad, 512) bf16 -> o: (TILE_M, 512) bf16.
    # Bias is folded into w (constant-1.0 column in x), f32 accumulation.
    o_ref[...] = jnp.dot(
        x_ref[...], w_ref[...], preferred_element_type=jnp.float32
    ).astype(o_ref.dtype)


def fused_conv_matmul(patches, w_fused, tile_m):
    """patches: (rows_pad, K_pad) bf16 im2col rows -> (rows_pad, 512) bf16."""
    rows_pad, k_pad = patches.shape
    return pl.pallas_call(
        _fused_conv_kernel,
        out_shape=jax.ShapeDtypeStruct((rows_pad, FUSED_OUT), jnp.bfloat16),
        grid=(rows_pad // tile_m,),
        in_specs=[
            pl.BlockSpec((tile_m, k_pad), lambda i: (i, 0)),
            pl.BlockSpec((k_pad, FUSED_OUT), lambda i: (0, 0)),
        ],
        out_specs=pl.BlockSpec((tile_m, FUSED_OUT), lambda i: (i, 0)),
        compiler_params=pltpu.CompilerParams(
            dimension_semantics=("parallel",),
            vmem_limit_bytes=VMEM_LIMIT_BYTES),
    )(patches, w_fused)


def _attn_kernel(theta_ref, phi_ref, g_ref, o_ref):
    # theta: (1, TILE_N, 128) bf16, phi: (1, M, 128) bf16, g: (1, M, 256) bf16
    # o: (1, 256, TILE_N) f32   (already transposed -> no XLA transpose after)
    th = theta_ref[0]   # (TILE_N, 128)
    ph = phi_ref[0]     # (M, 128)
    gg = g_ref[0]       # (M, 256)

    # s_t[m, n] = sum_c phi[m, c] * theta[n, c]   (q @ k^T pattern, transposed)
    s = lax.dot_general(ph, th, (((1,), (1,)), ((), ())),
                        preferred_element_type=jnp.float32)      # (M, TILE_N)

    # softmax over the key axis (sublane axis of the transposed block)
    s = s - jnp.max(s, axis=0, keepdims=True)
    e = jnp.exp(s)
    inv_l = pl.reciprocal(jnp.sum(e, axis=0, keepdims=True), approx=True)
    p = (e * inv_l).astype(gg.dtype)                              # bf16 probs

    # out_t[c, n] = sum_m g[m, c] * p[m, n]  -> lane-dense TILE_N-wide store
    o_ref[0] = lax.dot_general(gg, p, (((0,), (0,)), ((), ())),
                               preferred_element_type=jnp.float32)


def attention(theta, phi, g, tile_n):
    """theta: (B, N_pad, 128), phi: (B, M, 128), g: (B, M, 256) -> (B, 256, N_pad)."""
    B, n_pad, tp = theta.shape
    M = phi.shape[1]
    return pl.pallas_call(
        _attn_kernel,
        out_shape=jax.ShapeDtypeStruct((B, G_P, n_pad), jnp.float32),
        grid=(B, n_pad // tile_n),
        in_specs=[
            pl.BlockSpec((1, tile_n, tp), lambda b, n: (b, n, 0)),
            # phi / g stay resident per batch (small M here).
            # TODO(synk): key-axis flash tiling + pl.Buffered(1) for very
            # large M on v7x (bf16 already halves their VMEM residency).
            pl.BlockSpec((1, M, tp), lambda b, n: (b, 0, 0)),
            pl.BlockSpec((1, M, G_P), lambda b, n: (b, 0, 0)),
        ],
        out_specs=pl.BlockSpec((1, G_P, tile_n), lambda b, n: (b, 0, n)),
        compiler_params=pltpu.CompilerParams(
            dimension_semantics=("parallel", "parallel"),
            vmem_limit_bytes=VMEM_LIMIT_BYTES),
    )(theta, phi, g)


# ---------------------------------------------------------------------------
# Plain-JAX glue (im2col, maxpool, padding, reshapes)
# ---------------------------------------------------------------------------
def im2col(x, kh, kw):
    """x: (B, C, H, W) -> (B, Ho*Wo, C*kh*kw); column index order (c, dy, dx)."""
    B, C, H, W = x.shape
    Ho, Wo = H - kh + 1, W - kw + 1
    cols = []
    for dy in range(kh):
        for dx in range(kw):
            cols.append(x[:, :, dy:dy + Ho, dx:dx + Wo])
    p = jnp.stack(cols, axis=2)                  # (B, C, kh*kw, Ho, Wo)
    p = p.reshape(B, C * kh * kw, Ho * Wo)       # matches (out, C, kh, kw) flatten
    return p.transpose(0, 2, 1)                  # (B, Ho*Wo, C*kh*kw)


def maxpool2x2_nhwc(x):
    """x: (B, H, W, C) -> (B, H//2, W//2, C)  (MaxPool2d(2, stride=2))."""
    B, H, W, C = x.shape
    return x.reshape(B, H // 2, 2, W // 2, 2, C).max(axis=(2, 4))


def maxpool2x2_nchw(x):
    B, C, H, W = x.shape
    return x.reshape(B, C, H // 2, 2, W // 2, 2).max(axis=(3, 5))


def prepare_params(w_theta, b_theta, w_phi, b_phi, w_g, b_g):
    """Fuse the three conv weights (+ folded biases) into one (K_pad, 512) bf16 mat."""
    C = w_theta.shape[1]
    K = C * KSIZE * KSIZE
    k_pad = _round_up(K + 1, 128)   # +1: bias row, matched by a 1.0 patch column

    def flat_pad(w, b, out_pad):
        out_ch = w.shape[0]
        wf = jnp.concatenate([w.reshape(out_ch, K).T, b[None, :]], axis=0)  # (K+1, out)
        return jnp.pad(wf, ((0, k_pad - (K + 1)), (0, out_pad - out_ch)))

    w_fused = jnp.concatenate(
        [flat_pad(w_theta, b_theta, THETA_P),
         flat_pad(w_phi, b_phi, THETA_P),
         flat_pad(w_g, b_g, G_P)], axis=1)                         # (K_pad, 512)
    return {"w_fused": w_fused.astype(jnp.bfloat16)}


def self_attn_forward(x, params):
    B, C, H, W = x.shape
    Ho, Wo = H - (KSIZE - 1), W - (KSIZE - 1)
    # The module's maxpool + .view(-1, ch, N//4) requires even post-conv dims.
    assert Ho % 2 == 0 and Wo % 2 == 0, "post-conv spatial dims must be even"
    N = Ho * Wo
    M = (Ho // 2) * (Wo // 2)
    K = C * KSIZE * KSIZE
    k_pad = params["w_fused"].shape[0]

    # im2col once, emitted directly in bf16 and in the padded layout the kernel
    # consumes (halves the bytes XLA writes and Pallas re-reads).
    # TODO(synk): move the patch construction into the conv kernel itself.
    patches = im2col(x.astype(jnp.bfloat16), KSIZE, KSIZE).reshape(B * N, K)
    ones = jnp.ones((B * N, 1), jnp.bfloat16)                     # bias column
    patches = jnp.concatenate([patches, ones], axis=1)            # (B*N, K+1)

    rows = B * N
    tile_m = _pick_tile_m(rows)
    rows_pad = _round_up(rows, tile_m)
    patches = jnp.pad(patches, ((0, rows_pad - rows), (0, k_pad - (K + 1))))

    fused = fused_conv_matmul(patches, params["w_fused"], tile_m)
    fused = fused[:rows]                                          # (B*N, 512) bf16

    theta = fused[:, :THETA_P].reshape(B, N, THETA_P)             # (B, N, 128)
    phi = fused[:, THETA_P:2 * THETA_P].reshape(B, Ho, Wo, THETA_P)
    g = fused[:, 2 * THETA_P:].reshape(B, Ho, Wo, G_P)

    phi = maxpool2x2_nhwc(phi).reshape(B, M, THETA_P)             # (B, M, 128)
    g = maxpool2x2_nhwc(g).reshape(B, M, G_P)                     # (B, M, 256)

    tile_n = _pick_tile_n(N, M)
    n_pad = _round_up(N, tile_n)
    theta = jnp.pad(theta, ((0, 0), (0, n_pad - N), (0, 0)))      # zero query rows

    attn_t = attention(theta, phi, g, tile_n)                     # (B, 256, n_pad) f32
    attn_t = attn_t[:, :G_CH, :N]                                 # (B, 200, N)
    return attn_t.reshape(B, G_CH, Ho, Wo)


# ---------------------------------------------------------------------------
# Reference (pure JAX/XLA) mirroring the kernel's operand precision
# (bf16 MXU operands, f32 accumulation) for a tight sanity check.
# ---------------------------------------------------------------------------
def ref_forward(x, p4d):
    xb = x.astype(jnp.bfloat16)

    def conv(w, b):
        y = lax.conv_general_dilated(
            xb, w.astype(jnp.bfloat16), window_strides=(1, 1), padding="VALID",
            dimension_numbers=("NCHW", "OIHW", "NCHW"),
            preferred_element_type=jnp.float32)
        return (y + b[None, :, None, None]).astype(jnp.bfloat16)

    B, C, H, W = x.shape
    Ho, Wo = H - 6, W - 6
    N = Ho * Wo
    theta = conv(p4d["w_theta"], p4d["b_theta"]).reshape(B, THETA_CH, N)
    phi = maxpool2x2_nchw(conv(p4d["w_phi"], p4d["b_phi"])).reshape(B, THETA_CH, N // 4)
    g = maxpool2x2_nchw(conv(p4d["w_g"], p4d["b_g"])).reshape(B, G_CH, N // 4)
    scores = jnp.einsum("bcn,bcm->bnm", theta, phi,
                        preferred_element_type=jnp.float32)
    attn = jax.nn.softmax(scores, axis=-1)
    attn_g = jnp.einsum("bcm,bnm->bcn", g, attn.astype(jnp.bfloat16),
                        preferred_element_type=jnp.float32)
    return attn_g.reshape(B, G_CH, Ho, Wo)


# ---------------------------------------------------------------------------
if __name__ == "__main__":
    B, C, H, W = 2, IN_CH, 16, 16
    key = jax.random.PRNGKey(0)
    kx, k1, k2, k3, k4, k5, k6 = jax.random.split(key, 7)

    x = jax.random.normal(kx, (B, C, H, W), dtype=jnp.float32)

    # Deterministic synthetic parameters (PyTorch conv shapes: (out, in, 7, 7)).
    w_theta4 = 0.05 * jax.random.normal(k1, (THETA_CH, C, KSIZE, KSIZE), jnp.float32)
    w_phi4 = 0.05 * jax.random.normal(k2, (THETA_CH, C, KSIZE, KSIZE), jnp.float32)
    w_g4 = 0.05 * jax.random.normal(k3, (G_CH, C, KSIZE, KSIZE), jnp.float32)
    b_theta = 0.05 * jax.random.normal(k4, (THETA_CH,), jnp.float32)
    b_phi = 0.05 * jax.random.normal(k5, (THETA_CH,), jnp.float32)
    b_g = 0.05 * jax.random.normal(k6, (G_CH,), jnp.float32)

    params = prepare_params(w_theta4, b_theta, w_phi4, b_phi, w_g4, b_g)
    params4d = {
        "w_theta": w_theta4, "b_theta": b_theta,
        "w_phi": w_phi4, "b_phi": b_phi,
        "w_g": w_g4, "b_g": b_g,
    }

    forward = jax.jit(self_attn_forward)
    out = jax.block_until_ready(forward(x, params))
    ref = jax.block_until_ready(ref_forward(x, params4d))

    assert out.shape == (B, G_CH, H - 6, W - 6), out.shape
    # bf16 operands / f32 accumulation on both sides; residual gap is only
    # rounding-point / summation-order + the approx reciprocal (~1e-4 rel).
    assert jnp.allclose(out, ref, atol=2e-2, rtol=2e-2), (
        float(jnp.max(jnp.abs(out - ref))))
    print("KERNEL_OK")
</pallas_src>

<mosaic_0001>
module attributes {stable_mosaic.version = 11 : i64} {
  func.func @_fused_conv_kernel(%arg0: i32, %arg1: memref<128x256xbf16, #tpu.memory_space<vmem>>, %arg2: memref<256x512xbf16, #tpu.memory_space<vmem>>, %arg3: memref<128x512xbf16, #tpu.memory_space<vmem>>) attributes {dimension_semantics = [#tpu.dimension_semantics<parallel>], iteration_bounds = array<i64: 2>, scalar_prefetch = 0 : i64, scratch_operands = 0 : i64, tpu.core_type = #tpu.core_type<tc>, window_params = [{transform_indices = @transform_0, window_bounds = array<i64: 128, 256>}, {pipeline_mode = #tpu.pipeline_mode<synchronous>, transform_indices = @transform_1, window_bounds = array<i64: 256, 512>}, {transform_indices = @transform_2, window_bounds = array<i64: 128, 512>}]} {
    %c0 = arith.constant 0 : index
    %c0_0 = arith.constant 0 : index
    %0 = vector.load %arg1[%c0, %c0_0] : memref<128x256xbf16, #tpu.memory_space<vmem>>, vector<128x256xbf16>
    %c0_1 = arith.constant 0 : index
    %c0_2 = arith.constant 0 : index
    %1 = vector.load %arg2[%c0_1, %c0_2] : memref<256x512xbf16, #tpu.memory_space<vmem>>, vector<256x512xbf16>
    %cst = arith.constant dense<0.000000e+00> : vector<128x512xf32>
    %2 = tpu.matmul %0, %1, %cst {dimension_numbers = #tpu.dot_dimension_numbers<[1], [0], [0], [1], [0, 0, 1, 1], [], []>} : vector<128x256xbf16>, vector<256x512xbf16>, vector<128x512xf32> -> vector<128x512xf32>
    %3 = arith.truncf %2 : vector<128x512xf32> to vector<128x512xbf16>
    %c0_3 = arith.constant 0 : index
    %c0_4 = arith.constant 0 : index
    %4 = vector.load %arg3[%c0_3, %c0_4] : memref<128x512xbf16, #tpu.memory_space<vmem>>, vector<128x512xbf16>
    tpu.vector_store %arg3[%c0_3, %c0_4], %3 {strides = array<i32>} : memref<128x512xbf16, #tpu.memory_space<vmem>>, vector<128x512xbf16>,
    return
  }
  func.func @transform_0(%arg0: i32) -> (i32, i32) {
    %c0_i32 = arith.constant 0 : i32
    %c0_i32_0 = arith.constant 0 : i32
    return %arg0, %c0_i32 : i32, i32
  }
  func.func @transform_1(%arg0: i32) -> (i32, i32) {
    %c0_i32 = arith.constant 0 : i32
    %c0_i32_0 = arith.constant 0 : i32
    %c0_i32_1 = arith.constant 0 : i32
    return %c0_i32, %c0_i32_0 : i32, i32
  }
  func.func @transform_2(%arg0: i32) -> (i32, i32) {
    %c0_i32 = arith.constant 0 : i32
    %c0_i32_0 = arith.constant 0 : i32
    return %arg0, %c0_i32 : i32, i32
  }
}

module attributes {stable_mosaic.version = 11 : i64} {
  func.func @_attn_kernel(%arg0: i32, %arg1: i32, %arg2: memref<1x128x128xbf16, #tpu.memory_space<vmem>>, %arg3: memref<1x25x128xbf16, #tpu.memory_space<vmem>>, %arg4: memref<1x25x256xbf16, #tpu.memory_space<vmem>>, %arg5: memref<1x256x128xf32, #tpu.memory_space<vmem>>) attributes {dimension_semantics = [#tpu.dimension_semantics<parallel>, #tpu.dimension_semantics<parallel>], iteration_bounds = array<i64: 2, 1>, scalar_prefetch = 0 : i64, scratch_operands = 0 : i64, tpu.core_type = #tpu.core_type<tc>, window_params = [{transform_indices = @transform_0, window_bounds = array<i64: 1, 128, 128>}, {transform_indices = @transform_1, window_bounds = array<i64: 1, 25, 128>}, {transform_indices = @transform_2, window_bounds = array<i64: 1, 25, 256>}, {transform_indices = @transform_3, window_bounds = array<i64: 1, 256, 128>}]} {
    %c0 = arith.constant 0 : index
    %c0_0 = arith.constant 0 : index
    %c0_1 = arith.constant 0 : index
    %0 = vector.load %arg2[%c0, %c0_0, %c0_1] : memref<1x128x128xbf16, #tpu.memory_space<vmem>>, vector<1x128x128xbf16>
    %1 = vector.shape_cast %0 : vector<1x128x128xbf16> to vector<128x128xbf16>
    %c0_2 = arith.constant 0 : index
    %c0_3 = arith.constant 0 : index
    %c0_4 = arith.constant 0 : index
    %2 = vector.load %arg3[%c0_2, %c0_3, %c0_4] : memref<1x25x128xbf16, #tpu.memory_space<vmem>>, vector<1x25x128xbf16>
    %3 = vector.shape_cast %2 : vector<1x25x128xbf16> to vector<25x128xbf16>
    %c0_5 = arith.constant 0 : index
    %c0_6 = arith.constant 0 : index
    %c0_7 = arith.constant 0 : index
    %4 = vector.load %arg4[%c0_5, %c0_6, %c0_7] : memref<1x25x256xbf16, #tpu.memory_space<vmem>>, vector<1x25x256xbf16>
    %5 = vector.shape_cast %4 : vector<1x25x256xbf16> to vector<25x256xbf16>
    %cst = arith.constant dense<0.000000e+00> : vector<25x128xf32>
    %6 = tpu.matmul %3, %1, %cst {dimension_numbers = #tpu.dot_dimension_numbers<[1], [1], [0], [0], [0, 0, 1, 0], [], []>} : vector<25x128xbf16>, vector<128x128xbf16>, vector<25x128xf32> -> vector<25x128xf32>
    %cst_8 = arith.constant dense<0xFF800000> : vector<128xf32>
    %7 = vector.multi_reduction <maximumf>, %6, %cst_8 [0] : vector<25x128xf32> to vector<128xf32>
    %8 = vector.shape_cast %7 : vector<128xf32> to vector<1x128xf32>
    %9 = vector.broadcast %8 : vector<1x128xf32> to vector<25x128xf32>
    %10 = arith.subf %6, %9 : vector<25x128xf32>
    %11 = math.exp %10 : vector<25x128xf32>
    %cst_9 = arith.constant dense<0.000000e+00> : vector<128xf32>
    %12 = vector.multi_reduction <add>, %11, %cst_9 [0] : vector<25x128xf32> to vector<128xf32>
    %13 = vector.shape_cast %12 : vector<128xf32> to vector<1x128xf32>
    %14 = tpu.reciprocal %13 {approx = true} : vector<1x128xf32> -> vector<1x128xf32>
    %15 = vector.broadcast %14 : vector<1x128xf32> to vector<25x128xf32>
    %16 = arith.mulf %11, %15 : vector<25x128xf32>
    %17 = arith.truncf %16 : vector<25x128xf32> to vector<25x128xbf16>
    %cst_10 = arith.constant dense<0.000000e+00> : vector<256x128xf32>
    %18 = tpu.matmul %5, %17, %cst_10 {dimension_numbers = #tpu.dot_dimension_numbers<[0], [0], [1], [1], [0, 1, 1, 1], [], []>} : vector<25x256xbf16>, vector<25x128xbf16>, vector<256x128xf32> -> vector<256x128xf32>
    %c0_11 = arith.constant 0 : index
    %c0_12 = arith.constant 0 : index
    %c0_13 = arith.constant 0 : index
    %19 = vector.load %arg5[%c0_11, %c0_12, %c0_13] : memref<1x256x128xf32, #tpu.memory_space<vmem>>, vector<1x256x128xf32>
    %20 = vector.shape_cast %19 : vector<1x256x128xf32> to vector<256x128xf32>
    %21 = vector.shape_cast %18 : vector<256x128xf32> to vector<1x256x128xf32>
    tpu.vector_store %arg5[%c0_11, %c0_12, %c0_13], %21 {strides = array<i32>} : memref<1x256x128xf32, #tpu.memory_space<vmem>>, vector<1x256x128xf32>,
    return
  }
  func.func @transform_0(%arg0: i32, %arg1: i32) -> (i32, i32, i32) {
    %c0_i32 = arith.constant 0 : i32
    %c0_i32_0 = arith.constant 0 : i32
    return %arg0, %arg1, %c0_i32 : i32, i32, i32
  }
  func.func @transform_1(%arg0: i32, %arg1: i32) -> (i32, i32, i32) {
    %c0_i32 = arith.constant 0 : i32
    %c0_i32_0 = arith.constant 0 : i32
    %c0_i32_1 = arith.constant 0 : i32
    return %arg0, %c0_i32, %c0_i32_0 : i32, i32, i32
  }
  func.func @transform_2(%arg0: i32, %arg1: i32) -> (i32, i32, i32) {
    %c0_i32 = arith.constant 0 : i32
    %c0_i32_0 = arith.constant 0 : i32
    %c0_i32_1 = arith.constant 0 : i32
    return %arg0, %c0_i32, %c0_i32_0 : i32, i32, i32
  }
  func.func @transform_3(%arg0: i32, %arg1: i32) -> (i32, i32, i32) {
    %c0_i32 = arith.constant 0 : i32
    %c0_i32_0 = arith.constant 0 : i32
    return %arg0, %c0_i32, %arg1 : i32, i32, i32
  }
}

</mosaic_0001>

<llo_original>
// kernel: self_attn_forward.2
$region0: #{self_attn_forward.2}
  #allocation0 [shape = 'u32[]', space=smem, size = 0x4, offset = 0x4, fixed_abs, tag = 'smem constant byte address 0x4 - core index']
  #allocation1 [shape = 'u32[72,128]{1,0:T(1,128)}', space=vmem, size = 0x9000, scoped, tag = 'internal scratch']
  %s0 = inlined_call_operand.vmem [shape: bf16[256,256], index: 0, kind: input, shape index: {}]
  %s1 = inlined_call_operand.vmem [shape: bf16[256,512], index: 1, kind: input, shape index: {}]
  %s2 = inlined_call_operand.vmem [shape: bf16[256,512], index: 2, kind: output, shape index: {}]
  %s3 = sld [smem:[#allocation0]]
  $region41: #{self_attn_forward.2} parent=0
    _
  %s5 = ssub.s32 1, %s3
  %s6 = scalar_select 0, %s5, %s3
  loop: start=0, step=1, limit=4
  $region2: #{self_attn_forward.2} parent=0 // loop_pre_header
    _
  $region3: #{self_attn_forward.2} parent=0 // loop_header
    %s8 = sphi 0, %s12
    %p9 = scmp.ge.s32.totalorder %s8, 4
    %s18 = sphi 0, %s20
    %s21 = sphi 0, %s18
    %s22 = sphi 0, %s21
    %s38 = sphi 0, %s22
    %s42 = sphi 0, %s42
    %s44 = sphi 0, %s42
    %s45 = sphi 0, %s44
    %s59 = sphi 0, %s45
    %s65 = sphi 0, %s67
    %s68 = sphi 0, %s65
    %s69 = sphi 0, %s68
    %s85 = sphi 0, %s69
  $region4: #{self_attn_forward.2} parent=0 // loop_header_branch
    %11 = sbr.rel (%p9) target = $region8
  $region5: #{self_attn_forward.2} parent=0 // loop_body
    %s13 = ssub.s32 %s8, 1
    %s14 = ssub.s32 %s8, 2
    %s15 = sadd.s32 %s8, 1
    %s16 = ssub.s32 %s8, %s15
    %p17 = scmp.eq.s32.totalorder %s16, 0
    %s19 = sadd.s32 %s18, 1
    %s20 = scalar_select %p17, %s18, %s19
    %p23 = pneg %p17
    %p24 = scmp.eq.s32.totalorder %s8, 1
    %p25 = por %p23, %p24
    %p26 = scmp.ne.s32.totalorder %s18, %s21
    %p27 = scmp.eq.s32.totalorder %s8, 0
    %p28 = por %p26, %p27
    %p29 = scmp.ne.s32.totalorder %s18, %s21
    %p30 = scmp.eq.s32.totalorder %s13, 1
    %p31 = por %p29, %p30
    %p32 = scmp.ne.s32.totalorder %s21, %s22
    %p33 = scmp.eq.s32.totalorder %s13, 0
    %p34 = por %p32, %p33
    %p35 = scmp.ne.s32.totalorder %s21, %s22
    %p36 = scmp.eq.s32.totalorder %s14, 1
    %p37 = por %p35, %p36
    %p39 = scmp.ne.s32.totalorder %s22, %s38
    %p40 = scmp.eq.s32.totalorder %s14, 0
    %p41 = por %p39, %p40
    %s43 = sadd.s32 %s42, 1
    %p46 = scmp.eq.s32.totalorder %s8, 1
    %p47 = scmp.ne.s32.totalorder %s42, %s44
    %p48 = scmp.eq.s32.totalorder %s8, 0
    %p49 = por %p47, %p48
    %p50 = scmp.ne.s32.totalorder %s42, %s44
    %p51 = scmp.eq.s32.totalorder %s13, 1
    %p52 = por %p50, %p51
    %p53 = scmp.ne.s32.totalorder %s44, %s45
    %p54 = scmp.eq.s32.totalorder %s13, 0
    %p55 = por %p53, %p54
    %p56 = scmp.ne.s32.totalorder %s44, %s45
    %p57 = scmp.eq.s32.totalorder %s14, 1
    %p58 = por %p56, %p57
    %p60 = scmp.ne.s32.totalorder %s45, %s59
    %p61 = scmp.eq.s32.totalorder %s14, 0
    %p62 = por %p60, %p61
    %s63 = ssub.s32 %s8, %s15
    %p64 = scmp.eq.s32.totalorder %s63, 0
    %s66 = sadd.s32 %s65, 1
    %s67 = scalar_select %p64, %s65, %s66
    %p70 = pneg %p64
    %p71 = scmp.eq.s32.totalorder %s8, 1
    %p72 = por %p70, %p71
    %p73 = scmp.ne.s32.totalorder %s65, %s68
    %p74 = scmp.eq.s32.totalorder %s8, 0
    %p75 = por %p73, %p74
    %p76 = scmp.ne.s32.totalorder %s65, %s68
    %p77 = scmp.eq.s32.totalorder %s13, 1
    %p78 = por %p76, %p77
    %p79 = scmp.ne.s32.totalorder %s68, %s69
    %p80 = scmp.eq.s32.totalorder %s13, 0
    %p81 = por %p79, %p80
    %p82 = scmp.ne.s32.totalorder %s68, %s69
    %p83 = scmp.eq.s32.totalorder %s14, 1
    %p84 = por %p82, %p83
    %p86 = scmp.ne.s32.totalorder %s69, %s85
    %p87 = scmp.eq.s32.totalorder %s14, 0
    %p88 = por %p86, %p87
    %p89 = scmp.le.s32.totalorder 1, %s8
    %p90 = scmp.lt.s32.totalorder %s8, 3
    %p91 = pnand %p89, %p90
    %p92 = pneg %p91
    // Predicated region
    $region9: #{self_attn_forward.2} parent=5 // pred_check
      _
    $region10: #{self_attn_forward.2} parent=5 // pred_check_branch
      %94 = sbr.rel (%p91) target = $region12
    $region11: #{self_attn_forward.2} parent=5 // pred_region
      %s95 = ssub.s32 %s8, 1
      // Predicated region
      $region13: #{self_attn_forward.2} parent=11 // pred_check
        %p96 = pneg %p55
      $region14: #{self_attn_forward.2} parent=11 // pred_check_branch
        %98 = sbr.rel (%p96) target = $region16
      $region15: #{self_attn_forward.2} parent=11 // pred_region
        _
      $region16: #{self_attn_forward.2} parent=11 // pred_fallthru
        _
    $region12: #{self_attn_forward.2} parent=5 // pred_fallthru
      _
    %p99 = scmp.lt.s32.totalorder %s8, 2
    // Predicated region
    $region17: #{self_attn_forward.2} parent=5 // pred_check
      %p100 = pneg %p99
    $region18: #{self_attn_forward.2} parent=5 // pred_check_branch
      %102 = sbr.rel (%p100) target = $region20
    $region19: #{self_attn_forward.2} parent=5 // pred_region
      // Predicated region
      $region21: #{self_attn_forward.2} parent=19 // pred_check
        %p103 = pneg %p28
      $region22: #{self_attn_forward.2} parent=19 // pred_check_branch
        %105 = sbr.rel (%p103) target = $region24
      $region23: #{self_attn_forward.2} parent=19 // pred_region
        %s106 = smul.u32 16, %s8
        %p107 = scmp.lt.s32.totalorder %s106, 31
        %s108 = scalar_select %p107, %s106, 31
        %s109 = smul.addr %s108, 2
        %s110 = smul.addr %s109, 4
        %s111 = scalar_lea.vmem %s0, %s110
        %s112 = smul.u32 16, %s8
      $region24: #{self_attn_forward.2} parent=19 // pred_fallthru
        _
    $region20: #{self_attn_forward.2} parent=5 // pred_fallthru
      _
    %p113 = scmp.le.s32.totalorder 1, %s8
    %p114 = scmp.lt.s32.totalorder %s8, 3
    %p115 = pnand %p113, %p114
    %p116 = pneg %p115
    // Predicated region
    $region25: #{self_attn_forward.2} parent=5 // pred_check
      _
    $region26: #{self_attn_forward.2} parent=5 // pred_check_branch
      %118 = sbr.rel (%p115) target = $region28
    $region27: #{self_attn_forward.2} parent=5 // pred_region
      %s119 = ssub.s32 %s8, 1
      %s120 = smul.u32 16, %s13
      %p121 = scmp.lt.s32.totalorder %s120, 31
      %s122 = scalar_select %p121, %s120, 31
      %s123 = smul.addr %s122, 2
      %s124 = smul.addr %s123, 4
      %s125 = scalar_lea.vmem %s0, %s124
      %p126 = pneg %p34
      %p127 = pneg %p31
      %p128 = pneg %p55
      %p129 = pneg %p52
      %p130 = pneg %p81
      %p131 = pneg %p78
      %s132 = smul.u32 16, %s13
      %p133 = scmp.lt.s32.totalorder %s132, 31
      %s134 = scalar_select %p133, %s132, 31
      %s135 = smul.addr %s134, 4
      %s136 = smul.addr %s135, 4
      %s137 = scalar_lea.vmem %s2, %s136
      %s138 = smul.u32 16, %s13
      %p139 = scmp.lt.s32.totalorder %s138, 31
      %s140 = scalar_select %p139, %s138, 31
      %s141 = smul.addr %s140, 2
      %s142 = smul.addr %s141, 4
      %s143 = scalar_lea.vmem %s0, %s142
      %s144 = smul.u32 16, %s13
      %s145 = smul.u32 16, %s13
      %p146 = scmp.lt.s32.totalorder %s145, 31
      %s147 = scalar_select %p146, %s145, 31
      %s148 = smul.addr %s147, 4
      %s149 = smul.addr %s148, 4
      %s150 = scalar_lea.vmem %s2, %s149
      %s151 = smul.u32 16, %s13
      %v152 = vld [vmem:[%s143] sm:$0xff]
      %v153 = vld [vmem:[%s143 + $0x8] sm:$0xff]
      %v154 = vld [vmem:[%s143 + $0x10] sm:$0xff]
      %v155 = vld [vmem:[%s143 + $0x18] sm:$0xff]
      %v156 = vld [vmem:[%s143 + $0x20] sm:$0xff]
      %v157 = vld [vmem:[%s143 + $0x28] sm:$0xff]
      %v158 = vld [vmem:[%s143 + $0x30] sm:$0xff]
      %v159 = vld [vmem:[%s143 + $0x38] sm:$0xff]
      %v160 = vld [vmem:[%s143 + $0x40] sm:$0xff]
      %v161 = vld [vmem:[%s143 + $0x48] sm:$0xff]
      %v162 = vld [vmem:[%s143 + $0x50] sm:$0xff]
      %v163 = vld [vmem:[%s143 + $0x58] sm:$0xff]
      %v164 = vld [vmem:[%s143 + $0x60] sm:$0xff]
      %v165 = vld [vmem:[%s143 + $0x68] sm:$0xff]
      %v166 = vld [vmem:[%s143 + $0x70] sm:$0xff]
      %v167 = vld [vmem:[%s143 + $0x78] sm:$0xff]
      %v168 = vld [vmem:[%s1] sm:$0xff]
      %v169 = vld [vmem:[%s1 + $0x8] sm:$0xff]
      %v170 = vld [vmem:[%s1 + $0x10] sm:$0xff]
      %v171 = vld [vmem:[%s1 + $0x18] sm:$0xff]
      %v172 = vld [vmem:[%s1 + $0x20] sm:$0xff]
      %v173 = vld [vmem:[%s1 + $0x28] sm:$0xff]
      %v174 = vld [vmem:[%s1 + $0x30] sm:$0xff]
      %v175 = vld [vmem:[%s1 + $0x38] sm:$0xff]
      %v176 = vld [vmem:[%s1 + $0x40] sm:$0xff]
      %v177 = vld [vmem:[%s1 + $0x48] sm:$0xff]
      %v178 = vld [vmem:[%s1 + $0x50] sm:$0xff]
      %v179 = vld [vmem:[%s1 + $0x58] sm:$0xff]
      %v180 = vld [vmem:[%s1 + $0x60] sm:$0xff]
      %v181 = vld [vmem:[%s1 + $0x68] sm:$0xff]
      %v182 = vld [vmem:[%s1 + $0x70] sm:$0xff]
      %v183 = vld [vmem:[%s1 + $0x78] sm:$0xff]
      %v184 = vld [vmem:[%s1 + $0x80] sm:$0xff]
      %v185 = vld [vmem:[%s1 + $0x88] sm:$0xff]
      %v186 = vld [vmem:[%s1 + $0x90] sm:$0xff]
      %v187 = vld [vmem:[%s1 + $0x98] sm:$0xff]
      %v188 = vld [vmem:[%s1 + $0xa0] sm:$0xff]
      %v189 = vld [vmem:[%s1 + $0xa8] sm:$0xff]
      %v190 = vld [vmem:[%s1 + $0xb0] sm:$0xff]
      %v191 = vld [vmem:[%s1 + $0xb8] sm:$0xff]
      %v192 = vld [vmem:[%s1 + $0xc0] sm:$0xff]
      %v193 = vld [vmem:[%s1 + $0xc8] sm:$0xff]
      %v194 = vld [vmem:[%s1 + $0xd0] sm:$0xff]
      %v195 = vld [vmem:[%s1 + $0xd8] sm:$0xff]
      %v196 = vld [vmem:[%s1 + $0xe0] sm:$0xff]
      %v197 = vld [vmem:[%s1 + $0xe8] sm:$0xff]
      %v198 = vld [vmem:[%s1 + $0xf0] sm:$0xff]
      %v199 = vld [vmem:[%s1 + $0xf8] sm:$0xff]
      %v200 = vld [vmem:[%s1 + $0x100] sm:$0xff]
      %v201 = vld [vmem:[%s1 + $0x108] sm:$0xff]
      %v202 = vld [vmem:[%s1 + $0x110] sm:$0xff]
      %v203 = vld [vmem:[%s1 + $0x118] sm:$0xff]
      %v204 = vld [vmem:[%s1 + $0x120] sm:$0xff]
      %v205 = vld [vmem:[%s1 + $0x128] sm:$0xff]
      %v206 = vld [vmem:[%s1 + $0x130] sm:$0xff]
      %v207 = vld [vmem:[%s1 + $0x138] sm:$0xff]
      %v208 = vld [vmem:[%s1 + $0x140] sm:$0xff]
      %v209 = vld [vmem:[%s1 + $0x148] sm:$0xff]
      %v210 = vld [vmem:[%s1 + $0x150] sm:$0xff]
      %v211 = vld [vmem:[%s1 + $0x158] sm:$0xff]
      %v212 = vld [vmem:[%s1 + $0x160] sm:$0xff]
      %v213 = vld [vmem:[%s1 + $0x168] sm:$0xff]
      %v214 = vld [vmem:[%s1 + $0x170] sm:$0xff]
      %v215 = vld [vmem:[%s1 + $0x178] sm:$0xff]
      %v216 = vld [vmem:[%s1 + $0x180] sm:$0xff]
      %v217 = vld [vmem:[%s1 + $0x188] sm:$0xff]
      %v218 = vld [vmem:[%s1 + $0x190] sm:$0xff]
      %v219 = vld [vmem:[%s1 + $0x198] sm:$0xff]
      %v220 = vld [vmem:[%s1 + $0x1a0] sm:$0xff]
      %v221 = vld [vmem:[%s1 + $0x1a8] sm:$0xff]
      %v222 = vld [vmem:[%s1 + $0x1b0] sm:$0xff]
      %v223 = vld [vmem:[%s1 + $0x1b8] sm:$0xff]
      %v224 = vld [vmem:[%s1 + $0x1c0] sm:$0xff]
      %v225 = vld [vmem:[%s1 + $0x1c8] sm:$0xff]
      %v226 = vld [vmem:[%s1 + $0x1d0] sm:$0xff]
      %v227 = vld [vmem:[%s1 + $0x1d8] sm:$0xff]
      %v228 = vld [vmem:[%s1 + $0x1e0] sm:$0xff]
      %v229 = vld [vmem:[%s1 + $0x1e8] sm:$0xff]
      %v230 = vld [vmem:[%s1 + $0x1f0] sm:$0xff]
      %v231 = vld [vmem:[%s1 + $0x1f8] sm:$0xff]
      %v248 = vunpack.c.l.b16 %v152
      %v249 = vunpack.c.h.b16 %v152
      %v250 = vunpack.c.l.b16 %v153
      %v251 = vunpack.c.h.b16 %v153
      %v252 = vunpack.c.l.b16 %v154
      %v253 = vunpack.c.h.b16 %v154
      %v254 = vunpack.c.l.b16 %v155
      %v255 = vunpack.c.h.b16 %v155
      %v256 = vunpack.c.l.b16 %v156
      %v257 = vunpack.c.h.b16 %v156
      %v258 = vunpack.c.l.b16 %v157
      %v259 = vunpack.c.h.b16 %v157
      %v260 = vunpack.c.l.b16 %v158
      %v261 = vunpack.c.h.b16 %v158
      %v262 = vunpack.c.l.b16 %v159
      %v263 = vunpack.c.h.b16 %v159
      %v264 = vunpack.c.l.b16 %v160
      %v265 = vunpack.c.h.b16 %v160
      %v266 = vunpack.c.l.b16 %v161
      %v267 = vunpack.c.h.b16 %v161
      %v268 = vunpack.c.l.b16 %v162
      %v269 = vunpack.c.h.b16 %v162
      %v270 = vunpack.c.l.b16 %v163
      %v271 = vunpack.c.h.b16 %v163
      %v272 = vunpack.c.l.b16 %v164
      %v273 = vunpack.c.h.b16 %v164
      %v274 = vunpack.c.l.b16 %v165
      %v275 = vunpack.c.h.b16 %v165
      %v276 = vunpack.c.l.b16 %v166
      %v277 = vunpack.c.h.b16 %v166
      %v278 = vunpack.c.l.b16 %v167
      %v279 = vunpack.c.h.b16 %v167
      %v280 = vpack.c.b16 %v250, %v248
      %v281 = vpack.c.b16 %v251, %v249
      %v282 = vpack.c.b16 %v254, %v252
      %v283 = vpack.c.b16 %v255, %v253
      %v284 = vpack.c.b16 %v258, %v256
      %v285 = vpack.c.b16 %v259, %v257
      %v286 = vpack.c.b16 %v262, %v260
      %v287 = vpack.c.b16 %v263, %v261
      %v288 = vpack.c.b16 %v266, %v264
      %v289 = vpack.c.b16 %v267, %v265
      %v290 = vpack.c.b16 %v270, %v268
      %v291 = vpack.c.b16 %v271, %v269
      %v292 = vpack.c.b16 %v274, %v272
      %v293 = vpack.c.b16 %v275, %v273
      %v294 = vpack.c.b16 %v278, %v276
      %v295 = vpack.c.b16 %v279, %v277
      %v376 = vunpack.c.l.b16 %v168
      %v377 = vunpack.c.h.b16 %v168
      %v378 = vunpack.c.l.b16 %v169
      %v379 = vunpack.c.h.b16 %v169
      %v380 = vunpack.c.l.b16 %v170
      %v381 = vunpack.c.h.b16 %v170
      %v382 = vunpack.c.l.b16 %v171
      %v383 = vunpack.c.h.b16 %v171
      %v384 = vunpack.c.l.b16 %v172
      %v385 = vunpack.c.h.b16 %v172
      %v386 = vunpack.c.l.b16 %v173
      %v387 = vunpack.c.h.b16 %v173
      %v388 = vunpack.c.l.b16 %v174
      %v389 = vunpack.c.h.b16 %v174
      %v390 = vunpack.c.l.b16 %v175
      %v391 = vunpack.c.h.b16 %v175
      %v392 = vunpack.c.l.b16 %v176
      %v393 = vunpack.c.h.b16 %v176
      %v394 = vunpack.c.l.b16 %v177
      %v395 = vunpack.c.h.b16 %v177
      %v396 = vunpack.c.l.b16 %v178
      %v397 = vunpack.c.h.b16 %v178
      %v398 = vunpack.c.l.b16 %v179
      %v399 = vunpack.c.h.b16 %v179
      %v400 = vunpack.c.l.b16 %v180
      %v401 = vunpack.c.h.b16 %v180
      %v402 = vunpack.c.l.b16 %v181
      %v403 = vunpack.c.h.b16 %v181
      %v404 = vunpack.c.l.b16 %v182
      %v405 = vunpack.c.h.b16 %v182
      %v406 = vunpack.c.l.b16 %v183
      %v407 = vunpack.c.h.b16 %v183
      %v408 = vunpack.c.l.b16 %v184
      %v409 = vunpack.c.h.b16 %v184
      %v410 = vunpack.c.l.b16 %v185
      %v411 = vunpack.c.h.b16 %v185
      %v412 = vunpack.c.l.b16 %v186
      %v413 = vunpack.c.h.b16 %v186
      %v414 = vunpack.c.l.b16 %v187
      %v415 = vunpack.c.h.b16 %v187
      %v416 = vunpack.c.l.b16 %v188
      %v417 = vunpack.c.h.b16 %v188
      %v418 = vunpack.c.l.b16 %v189
      %v419 = vunpack.c.h.b16 %v189
      %v420 = vunpack.c.l.b16 %v190
      %v421 = vunpack.c.h.b16 %v190
      %v422 = vunpack.c.l.b16 %v191
      %v423 = vunpack.c.h.b16 %v191
      %v424 = vunpack.c.l.b16 %v192
      %v425 = vunpack.c.h.b16 %v192
      %v426 = vunpack.c.l.b16 %v193
      %v427 = vunpack.c.h.b16 %v193
      %v428 = vunpack.c.l.b16 %v194
      %v429 = vunpack.c.h.b16 %v194
      %v430 = vunpack.c.l.b16 %v195
      %v431 = vunpack.c.h.b16 %v195
      %v432 = vunpack.c.l.b16 %v196
      %v433 = vunpack.c.h.b16 %v196
      %v434 = vunpack.c.l.b16 %v197
      %v435 = vunpack.c.h.b16 %v197
      %v436 = vunpack.c.l.b16 %v198
      %v437 = vunpack.c.h.b16 %v198
      %v438 = vunpack.c.l.b16 %v199
      %v439 = vunpack.c.h.b16 %v199
      %v440 = vunpack.c.l.b16 %v200
      %v441 = vunpack.c.h.b16 %v200
      %v442 = vunpack.c.l.b16 %v201
      %v443 = vunpack.c.h.b16 %v201
      %v444 = vunpack.c.l.b16 %v202
      %v445 = vunpack.c.h.b16 %v202
      %v446 = vunpack.c.l.b16 %v203
      %v447 = vunpack.c.h.b16 %v203
      %v448 = vunpack.c.l.b16 %v204
      %v449 = vunpack.c.h.b16 %v204
      %v450 = vunpack.c.l.b16 %v205
      %v451 = vunpack.c.h.b16 %v205
      %v452 = vunpack.c.l.b16 %v206
      %v453 = vunpack.c.h.b16 %v206
      %v454 = vunpack.c.l.b16 %v207
      %v455 = vunpack.c.h.b16 %v207
      %v456 = vunpack.c.l.b16 %v208
      %v457 = vunpack.c.h.b16 %v208
      %v458 = vunpack.c.l.b16 %v209
      %v459 = vunpack.c.h.b16 %v209
      %v460 = vunpack.c.l.b16 %v210
      %v461 = vunpack.c.h.b16 %v210
      %v462 = vunpack.c.l.b16 %v211
      %v463 = vunpack.c.h.b16 %v211
      %v464 = vunpack.c.l.b16 %v212
      %v465 = vunpack.c.h.b16 %v212
      %v466 = vunpack.c.l.b16 %v213
      %v467 = vunpack.c.h.b16 %v213
      %v468 = vunpack.c.l.b16 %v214
      %v469 = vunpack.c.h.b16 %v214
      %v470 = vunpack.c.l.b16 %v215
      %v471 = vunpack.c.h.b16 %v215
      %v472 = vunpack.c.l.b16 %v216
      %v473 = vunpack.c.h.b16 %v216
      %v474 = vunpack.c.l.b16 %v217
      %v475 = vunpack.c.h.b16 %v217
      %v476 = vunpack.c.l.b16 %v218
      %v477 = vunpack.c.h.b16 %v218
      %v478 = vunpack.c.l.b16 %v219
      %v479 = vunpack.c.h.b16 %v219
      %v480 = vunpack.c.l.b16 %v220
      %v481 = vunpack.c.h.b16 %v220
      %v482 = vunpack.c.l.b16 %v221
      %v483 = vunpack.c.h.b16 %v221
      %v484 = vunpack.c.l.b16 %v222
      %v485 = vunpack.c.h.b16 %v222
      %v486 = vunpack.c.l.b16 %v223
      %v487 = vunpack.c.h.b16 %v223
      %v488 = vunpack.c.l.b16 %v224
      %v489 = vunpack.c.h.b16 %v224
      %v490 = vunpack.c.l.b16 %v225
      %v491 = vunpack.c.h.b16 %v225
      %v492 = vunpack.c.l.b16 %v226
      %v493 = vunpack.c.h.b16 %v226
      %v494 = vunpack.c.l.b16 %v227
      %v495 = vunpack.c.h.b16 %v227
      %v496 = vunpack.c.l.b16 %v228
      %v497 = vunpack.c.h.b16 %v228
      %v498 = vunpack.c.l.b16 %v229
      %v499 = vunpack.c.h.b16 %v229
      %v500 = vunpack.c.l.b16 %v230
      %v501 = vunpack.c.h.b16 %v230
      %v502 = vunpack.c.l.b16 %v231
      %v503 = vunpack.c.h.b16 %v231
      %v504 = vpack.c.b16 %v380, %v376
      %v505 = vpack.c.b16 %v381, %v377
      %v506 = vpack.c.b16 %v382, %v378
      %v507 = vpack.c.b16 %v383, %v379
      %v508 = vpack.c.b16 %v388, %v384
      %v509 = vpack.c.b16 %v389, %v385
      %v510 = vpack.c.b16 %v390, %v386
      %v511 = vpack.c.b16 %v391, %v387
      %v512 = vpack.c.b16 %v396, %v392
      %v513 = vpack.c.b16 %v397, %v393
      %v514 = vpack.c.b16 %v398, %v394
      %v515 = vpack.c.b16 %v399, %v395
      %v516 = vpack.c.b16 %v404, %v400
      %v517 = vpack.c.b16 %v405, %v401
      %v518 = vpack.c.b16 %v406, %v402
      %v519 = vpack.c.b16 %v407, %v403
      %v520 = vpack.c.b16 %v412, %v408
      %v521 = vpack.c.b16 %v413, %v409
      %v522 = vpack.c.b16 %v414, %v410
      %v523 = vpack.c.b16 %v415, %v411
      %v524 = vpack.c.b16 %v420, %v416
      %v525 = vpack.c.b16 %v421, %v417
      %v526 = vpack.c.b16 %v422, %v418
      %v527 = vpack.c.b16 %v423, %v419
      %v528 = vpack.c.b16 %v428, %v424
      %v529 = vpack.c.b16 %v429, %v425
      %v530 = vpack.c.b16 %v430, %v426
      %v531 = vpack.c.b16 %v431, %v427
      %v532 = vpack.c.b16 %v436, %v432
      %v533 = vpack.c.b16 %v437, %v433
      %v534 = vpack.c.b16 %v438, %v434
      %v535 = vpack.c.b16 %v439, %v435
      %v536 = vpack.c.b16 %v444, %v440
      %v537 = vpack.c.b16 %v445, %v441
      %v538 = vpack.c.b16 %v446, %v442
      %v539 = vpack.c.b16 %v447, %v443
      %v540 = vpack.c.b16 %v452, %v448
      %v541 = vpack.c.b16 %v453, %v449
      %v542 = vpack.c.b16 %v454, %v450
      %v543 = vpack.c.b16 %v455, %v451
      %v544 = vpack.c.b16 %v460, %v456
      %v545 = vpack.c.b16 %v461, %v457
      %v546 = vpack.c.b16 %v462, %v458
      %v547 = vpack.c.b16 %v463, %v459
      %v548 = vpack.c.b16 %v468, %v464
      %v549 = vpack.c.b16 %v469, %v465
      %v550 = vpack.c.b16 %v470, %v466
      %v551 = vpack.c.b16 %v471, %v467
      %v552 = vpack.c.b16 %v476, %v472
      %v553 = vpack.c.b16 %v477, %v473
      %v554 = vpack.c.b16 %v478, %v474
      %v555 = vpack.c.b16 %v479, %v475
      %v556 = vpack.c.b16 %v484, %v480
      %v557 = vpack.c.b16 %v485, %v481
      %v558 = vpack.c.b16 %v486, %v482
      %v559 = vpack.c.b16 %v487, %v483
      %v560 = vpack.c.b16 %v492, %v488
      %v561 = vpack.c.b16 %v493, %v489
      %v562 = vpack.c.b16 %v494, %v490
      %v563 = vpack.c.b16 %v495, %v491
      %v564 = vpack.c.b16 %v500, %v496
      %v565 = vpack.c.b16 %v501, %v497
      %v566 = vpack.c.b16 %v502, %v498
      %v567 = vpack.c.b16 %v503, %v499
      %632 = vmatpush.bf16.msra.mxu0 %v532
      %633 = vmatpush.bf16.msra.mxu0 %v528
      %634 = vmatpush.bf16.msra.mxu0 %v524
      %635 = vmatpush.bf16.msra.mxu0 %v520
      %636 = vmatpush.bf16.msra.mxu0 %v516
      %637 = vmatpush.bf16.msra.mxu0 %v512
      %638 = vmatpush.bf16.msra.mxu0 %v508
      %639 = vmatpush.bf16.msra.mxu0 %v504
      %640 = vmatmul.bf16.gmra.mxu0 %v280
      %v641 = vpop.f32.mrf.mxu0
      %v642 = vadd.f32 0.0, %v641
      %v643 = vpop.f32.mrf.mxu0
      %v644 = vadd.f32 0.0, %v643
      %645 = vmatmul.bf16.gmra.mxu0 %v282
      %v646 = vpop.f32.mrf.mxu0
      %v647 = vadd.f32 0.0, %v646
      %v648 = vpop.f32.mrf.mxu0
      %v649 = vadd.f32 0.0, %v648
      %650 = vmatmul.bf16.gmra.mxu0 %v284
      %v651 = vpop.f32.mrf.mxu0
      %v652 = vadd.f32 0.0, %v651
      %v653 = vpop.f32.mrf.mxu0
      %v654 = vadd.f32 0.0, %v653
      %655 = vmatmul.bf16.gmra.mxu0 %v286
      %v656 = vpop.f32.mrf.mxu0
      %v657 = vadd.f32 0.0, %v656
      %v658 = vpop.f32.mrf.mxu0
      %v659 = vadd.f32 0.0, %v658
      %660 = vmatmul.bf16.gmra.mxu0 %v288
      %v661 = vpop.f32.mrf.mxu0
      %v662 = vadd.f32 0.0, %v661
      %v663 = vpop.f32.mrf.mxu0
      %v664 = vadd.f32 0.0, %v663
      %665 = vmatmul.bf16.gmra.mxu0 %v290
      %v666 = vpop.f32.mrf.mxu0
      %v667 = vadd.f32 0.0, %v666
      %v668 = vpop.f32.mrf.mxu0
      %v669 = vadd.f32 0.0, %v668
      %670 = vmatmul.bf16.gmra.mxu0 %v292
      %v671 = vpop.f32.mrf.mxu0
      %v672 = vadd.f32 0.0, %v671
      %v673 = vpop.f32.mrf.mxu0
      %v674 = vadd.f32 0.0, %v673
      %675 = vmatmul.bf16.gmra.mxu0 %v294
      %v676 = vpop.f32.mrf.mxu0
      %v677 = vadd.f32 0.0, %v676
      %v678 = vpop.f32.mrf.mxu0
      %v679 = vadd.f32 0.0, %v678
      %680 = vdwg.mxu0
      %681 = vmatpush.bf16.msra.mxu0 %v564
      %682 = vmatpush.bf16.msra.mxu0 %v560
      %683 = vmatpush.bf16.msra.mxu0 %v556
      %684 = vmatpush.bf16.msra.mxu0 %v552
      %685 = vmatpush.bf16.msra.mxu0 %v548
      %686 = vmatpush.bf16.msra.mxu0 %v544
      %687 = vmatpush.bf16.msra.mxu0 %v540
      %688 = vmatpush.bf16.msra.mxu0 %v536
      %689 = vmatmul.bf16.gmra.mxu0 %v281
      %v690 = vpop.f32.mrf.mxu0
      %v691 = vadd.f32 %v642, %v690
      %v692 = vpop.f32.mrf.mxu0
      %v693 = vadd.f32 %v644, %v692
      %694 = vmatmul.bf16.gmra.mxu0 %v283
      %v695 = vpop.f32.mrf.mxu0
      %v696 = vadd.f32 %v647, %v695
      %v697 = vpop.f32.mrf.mxu0
      %v698 = vadd.f32 %v649, %v697
      %699 = vmatmul.bf16.gmra.mxu0 %v285
      %v700 = vpop.f32.mrf.mxu0
      %v701 = vadd.f32 %v652, %v700
      %v702 = vpop.f32.mrf.mxu0
      %v703 = vadd.f32 %v654, %v702
      %704 = vmatmul.bf16.gmra.mxu0 %v287
      %v705 = vpop.f32.mrf.mxu0
      %v706 = vadd.f32 %v657, %v705
      %v707 = vpop.f32.mrf.mxu0
      %v708 = vadd.f32 %v659, %v707
      %709 = vmatmul.bf16.gmra.mxu0 %v289
      %v710 = vpop.f32.mrf.mxu0
      %v711 = vadd.f32 %v662, %v710
      %v712 = vpop.f32.mrf.mxu0
      %v713 = vadd.f32 %v664, %v712
      %714 = vmatmul.bf16.gmra.mxu0 %v291
      %v715 = vpop.f32.mrf.mxu0
      %v716 = vadd.f32 %v667, %v715
      %v717 = vpop.f32.mrf.mxu0
      %v718 = vadd.f32 %v669, %v717
      %719 = vmatmul.bf16.gmra.mxu0 %v293
      %v720 = vpop.f32.mrf.mxu0
      %v721 = vadd.f32 %v672, %v720
      %v722 = vpop.f32.mrf.mxu0
      %v723 = vadd.f32 %v674, %v722
      %724 = vmatmul.bf16.gmra.mxu0 %v295
      %v725 = vpop.f32.mrf.mxu0
      %v726 = vadd.f32 %v677, %v725
      %v727 = vpop.f32.mrf.mxu0
      %v728 = vadd.f32 %v679, %v727
      %729 = vdwg.mxu0
      %730 = vmatpush.bf16.msra.mxu0 %v533
      %731 = vmatpush.bf16.msra.mxu0 %v529
      %732 = vmatpush.bf16.msra.mxu0 %v525
      %733 = vmatpush.bf16.msra.mxu0 %v521
      %734 = vmatpush.bf16.msra.mxu0 %v517
      %735 = vmatpush.bf16.msra.mxu0 %v513
      %736 = vmatpush.bf16.msra.mxu0 %v509
      %737 = vmatpush.bf16.msra.mxu0 %v505
      %738 = vmatmul.bf16.gmra.mxu0 %v280
      %v739 = vpop.f32.mrf.mxu0
      %v740 = vadd.f32 0.0, %v739
      %v741 = vpop.f32.mrf.mxu0
      %v742 = vadd.f32 0.0, %v741
      %743 = vmatmul.bf16.gmra.mxu0 %v282
      %v744 = vpop.f32.mrf.mxu0
      %v745 = vadd.f32 0.0, %v744
      %v746 = vpop.f32.mrf.mxu0
      %v747 = vadd.f32 0.0, %v746
      %748 = vmatmul.bf16.gmra.mxu0 %v284
      %v749 = vpop.f32.mrf.mxu0
      %v750 = vadd.f32 0.0, %v749
      %v751 = vpop.f32.mrf.mxu0
      %v752 = vadd.f32 0.0, %v751
      %753 = vmatmul.bf16.gmra.mxu0 %v286
      %v754 = vpop.f32.mrf.mxu0
      %v755 = vadd.f32 0.0, %v754
      %v756 = vpop.f32.mrf.mxu0
      %v757 = vadd.f32 0.0, %v756
      %758 = vmatmul.bf16.gmra.mxu0 %v288
      %v759 = vpop.f32.mrf.mxu0
      %v760 = vadd.f32 0.0, %v759
      %v761 = vpop.f32.mrf.mxu0
      %v762 = vadd.f32 0.0, %v761
      %763 = vmatmul.bf16.gmra.mxu0 %v290
      %v764 = vpop.f32.mrf.mxu0
      %v765 = vadd.f32 0.0, %v764
      %v766 = vpop.f32.mrf.mxu0
      %v767 = vadd.f32 0.0, %v766
      %768 = vmatmul.bf16.gmra.mxu0 %v292
      %v769 = vpop.f32.mrf.mxu0
      %v770 = vadd.f32 0.0, %v769
      %v771 = vpop.f32.mrf.mxu0
      %v772 = vadd.f32 0.0, %v771
      %773 = vmatmul.bf16.gmra.mxu0 %v294
      %v774 = vpop.f32.mrf.mxu0
      %v775 = vadd.f32 0.0, %v774
      %v776 = vpop.f32.mrf.mxu0
      %v777 = vadd.f32 0.0, %v776
      %778 = vdwg.mxu0
      %779 = vmatpush.bf16.msra.mxu0 %v565
      %780 = vmatpush.bf16.msra.mxu0 %v561
      %781 = vmatpush.bf16.msra.mxu0 %v557
      %782 = vmatpush.bf16.msra.mxu0 %v553
      %783 = vmatpush.bf16.msra.mxu0 %v549
      %784 = vmatpush.bf16.msra.mxu0 %v545
      %785 = vmatpush.bf16.msra.mxu0 %v541
      %786 = vmatpush.bf16.msra.mxu0 %v537
      %787 = vmatmul.bf16.gmra.mxu0 %v281
      %v788 = vpop.f32.mrf.mxu0
      %v789 = vadd.f32 %v740, %v788
      %v790 = vpop.f32.mrf.mxu0
      %v791 = vadd.f32 %v742, %v790
      %792 = vmatmul.bf16.gmra.mxu0 %v283
      %v793 = vpop.f32.mrf.mxu0
      %v794 = vadd.f32 %v745, %v793
      %v795 = vpop.f32.mrf.mxu0
      %v796 = vadd.f32 %v747, %v795
      %797 = vmatmul.bf16.gmra.mxu0 %v285
      %v798 = vpop.f32.mrf.mxu0
      %v799 = vadd.f32 %v750, %v798
      %v800 = vpop.f32.mrf.mxu0
      %v801 = vadd.f32 %v752, %v800
      %802 = vmatmul.bf16.gmra.mxu0 %v287
      %v803 = vpop.f32.mrf.mxu0
      %v804 = vadd.f32 %v755, %v803
      %v805 = vpop.f32.mrf.mxu0
      %v806 = vadd.f32 %v757, %v805
      %807 = vmatmul.bf16.gmra.mxu0 %v289
      %v808 = vpop.f32.mrf.mxu0
      %v809 = vadd.f32 %v760, %v808
      %v810 = vpop.f32.mrf.mxu0
      %v811 = vadd.f32 %v762, %v810
      %812 = vmatmul.bf16.gmra.mxu0 %v291
      %v813 = vpop.f32.mrf.mxu0
      %v814 = vadd.f32 %v765, %v813
      %v815 = vpop.f32.mrf.mxu0
      %v816 = vadd.f32 %v767, %v815
      %817 = vmatmul.bf16.gmra.mxu0 %v293
      %v818 = vpop.f32.mrf.mxu0
      %v819 = vadd.f32 %v770, %v818
      %v820 = vpop.f32.mrf.mxu0
      %v821 = vadd.f32 %v772, %v820
      %822 = vmatmul.bf16.gmra.mxu0 %v295
      %v823 = vpop.f32.mrf.mxu0
      %v824 = vadd.f32 %v775, %v823
      %v825 = vpop.f32.mrf.mxu0
      %v826 = vadd.f32 %v777, %v825
      %827 = vdwg.mxu0
      %828 = vmatpush.bf16.msra.mxu0 %v534
      %829 = vmatpush.bf16.msra.mxu0 %v530
      %830 = vmatpush.bf16.msra.mxu0 %v526
      %831 = vmatpush.bf16.msra.mxu0 %v522
      %832 = vmatpush.bf16.msra.mxu0 %v518
      %833 = vmatpush.bf16.msra.mxu0 %v514
      %834 = vmatpush.bf16.msra.mxu0 %v510
      %835 = vmatpush.bf16.msra.mxu0 %v506
      %836 = vmatmul.bf16.gmra.mxu0 %v280
      %v837 = vpop.f32.mrf.mxu0
      %v838 = vadd.f32 0.0, %v837
      %v839 = vpop.f32.mrf.mxu0
      %v840 = vadd.f32 0.0, %v839
      %841 = vmatmul.bf16.gmra.mxu0 %v282
      %v842 = vpop.f32.mrf.mxu0
      %v843 = vadd.f32 0.0, %v842
      %v844 = vpop.f32.mrf.mxu0
      %v845 = vadd.f32 0.0, %v844
      %846 = vmatmul.bf16.gmra.mxu0 %v284
      %v847 = vpop.f32.mrf.mxu0
      %v848 = vadd.f32 0.0, %v847
      %v849 = vpop.f32.mrf.mxu0
      %v850 = vadd.f32 0.0, %v849
      %851 = vmatmul.bf16.gmra.mxu0 %v286
      %v852 = vpop.f32.mrf.mxu0
      %v853 = vadd.f32 0.0, %v852
      %v854 = vpop.f32.mrf.mxu0
      %v855 = vadd.f32 0.0, %v854
      %856 = vmatmul.bf16.gmra.mxu0 %v288
      %v857 = vpop.f32.mrf.mxu0
      %v858 = vadd.f32 0.0, %v857
      %v859 = vpop.f32.mrf.mxu0
      %v860 = vadd.f32 0.0, %v859
      %861 = vmatmul.bf16.gmra.mxu0 %v290
      %v862 = vpop.f32.mrf.mxu0
      %v863 = vadd.f32 0.0, %v862
      %v864 = vpop.f32.mrf.mxu0
      %v865 = vadd.f32 0.0, %v864
      %866 = vmatmul.bf16.gmra.mxu0 %v292
      %v867 = vpop.f32.mrf.mxu0
      %v868 = vadd.f32 0.0, %v867
      %v869 = vpop.f32.mrf.mxu0
      %v870 = vadd.f32 0.0, %v869
      %871 = vmatmul.bf16.gmra.mxu0 %v294
      %v872 = vpop.f32.mrf.mxu0
      %v873 = vadd.f32 0.0, %v872
      %v874 = vpop.f32.mrf.mxu0
      %v875 = vadd.f32 0.0, %v874
      %876 = vdwg.mxu0
      %877 = vmatpush.bf16.msra.mxu0 %v566
      %878 = vmatpush.bf16.msra.mxu0 %v562
      %879 = vmatpush.bf16.msra.mxu0 %v558
      %880 = vmatpush.bf16.msra.mxu0 %v554
      %881 = vmatpush.bf16.msra.mxu0 %v550
      %882 = vmatpush.bf16.msra.mxu0 %v546
      %883 = vmatpush.bf16.msra.mxu0 %v542
      %884 = vmatpush.bf16.msra.mxu0 %v538
      %885 = vmatmul.bf16.gmra.mxu0 %v281
      %v886 = vpop.f32.mrf.mxu0
      %v887 = vadd.f32 %v838, %v886
      %v888 = vpop.f32.mrf.mxu0
      %v889 = vadd.f32 %v840, %v888
      %890 = vmatmul.bf16.gmra.mxu0 %v283
      %v891 = vpop.f32.mrf.mxu0
      %v892 = vadd.f32 %v843, %v891
      %v893 = vpop.f32.mrf.mxu0
      %v894 = vadd.f32 %v845, %v893
      %895 = vmatmul.bf16.gmra.mxu0 %v285
      %v896 = vpop.f32.mrf.mxu0
      %v897 = vadd.f32 %v848, %v896
      %v898 = vpop.f32.mrf.mxu0
      %v899 = vadd.f32 %v850, %v898
      %900 = vmatmul.bf16.gmra.mxu0 %v287
      %v901 = vpop.f32.mrf.mxu0
      %v902 = vadd.f32 %v853, %v901
      %v903 = vpop.f32.mrf.mxu0
      %v904 = vadd.f32 %v855, %v903
      %905 = vmatmul.bf16.gmra.mxu0 %v289
      %v906 = vpop.f32.mrf.mxu0
      %v907 = vadd.f32 %v858, %v906
      %v908 = vpop.f32.mrf.mxu0
      %v909 = vadd.f32 %v860, %v908
      %910 = vmatmul.bf16.gmra.mxu0 %v291
      %v911 = vpop.f32.mrf.mxu0
      %v912 = vadd.f32 %v863, %v911
      %v913 = vpop.f32.mrf.mxu0
      %v914 = vadd.f32 %v865, %v913
      %915 = vmatmul.bf16.gmra.mxu0 %v293
      %v916 = vpop.f32.mrf.mxu0
      %v917 = vadd.f32 %v868, %v916
      %v918 = vpop.f32.mrf.mxu0
      %v919 = vadd.f32 %v870, %v918
      %920 = vmatmul.bf16.gmra.mxu0 %v295
      %v921 = vpop.f32.mrf.mxu0
      %v922 = vadd.f32 %v873, %v921
      %v923 = vpop.f32.mrf.mxu0
      %v924 = vadd.f32 %v875, %v923
      %925 = vdwg.mxu0
      %926 = vmatpush.bf16.msra.mxu0 %v535
      %927 = vmatpush.bf16.msra.mxu0 %v531
      %928 = vmatpush.bf16.msra.mxu0 %v527
      %929 = vmatpush.bf16.msra.mxu0 %v523
      %930 = vmatpush.bf16.msra.mxu0 %v519
      %931 = vmatpush.bf16.msra.mxu0 %v515
      %932 = vmatpush.bf16.msra.mxu0 %v511
      %933 = vmatpush.bf16.msra.mxu0 %v507
      %934 = vmatmul.bf16.gmra.mxu0 %v280
      %v935 = vpop.f32.mrf.mxu0
      %v936 = vadd.f32 0.0, %v935
      %v937 = vpop.f32.mrf.mxu0
      %v938 = vadd.f32 0.0, %v937
      %939 = vmatmul.bf16.gmra.mxu0 %v282
      %v940 = vpop.f32.mrf.mxu0
      %v941 = vadd.f32 0.0, %v940
      %v942 = vpop.f32.mrf.mxu0
      %v943 = vadd.f32 0.0, %v942
      %944 = vmatmul.bf16.gmra.mxu0 %v284
      %v945 = vpop.f32.mrf.mxu0
      %v946 = vadd.f32 0.0, %v945
      %v947 = vpop.f32.mrf.mxu0
      %v948 = vadd.f32 0.0, %v947
      %949 = vmatmul.bf16.gmra.mxu0 %v286
      %v950 = vpop.f32.mrf.mxu0
      %v951 = vadd.f32 0.0, %v950
      %v952 = vpop.f32.mrf.mxu0
      %v953 = vadd.f32 0.0, %v952
      %954 = vmatmul.bf16.gmra.mxu0 %v288
      %v955 = vpop.f32.mrf.mxu0
      %v956 = vadd.f32 0.0, %v955
      %v957 = vpop.f32.mrf.mxu0
      %v958 = vadd.f32 0.0, %v957
      %959 = vmatmul.bf16.gmra.mxu0 %v290
      %v960 = vpop.f32.mrf.mxu0
      %v961 = vadd.f32 0.0, %v960
      %v962 = vpop.f32.mrf.mxu0
      %v963 = vadd.f32 0.0, %v962
      %964 = vmatmul.bf16.gmra.mxu0 %v292
      %v965 = vpop.f32.mrf.mxu0
      %v966 = vadd.f32 0.0, %v965
      %v967 = vpop.f32.mrf.mxu0
      %v968 = vadd.f32 0.0, %v967
      %969 = vmatmul.bf16.gmra.mxu0 %v294
      %v970 = vpop.f32.mrf.mxu0
      %v971 = vadd.f32 0.0, %v970
      %v972 = vpop.f32.mrf.mxu0
      %v973 = vadd.f32 0.0, %v972
      %974 = vdwg.mxu0
      %975 = vmatpush.bf16.msra.mxu0 %v567
      %976 = vmatpush.bf16.msra.mxu0 %v563
      %977 = vmatpush.bf16.msra.mxu0 %v559
      %978 = vmatpush.bf16.msra.mxu0 %v555
      %979 = vmatpush.bf16.msra.mxu0 %v551
      %980 = vmatpush.bf16.msra.mxu0 %v547
      %981 = vmatpush.bf16.msra.mxu0 %v543
      %982 = vmatpush.bf16.msra.mxu0 %v539
      %983 = vmatmul.bf16.gmra.mxu0 %v281
      %v984 = vpop.f32.mrf.mxu0
      %v985 = vadd.f32 %v936, %v984
      %v986 = vpop.f32.mrf.mxu0
      %v987 = vadd.f32 %v938, %v986
      %988 = vmatmul.bf16.gmra.mxu0 %v283
      %v989 = vpop.f32.mrf.mxu0
      %v990 = vadd.f32 %v941, %v989
      %v991 = vpop.f32.mrf.mxu0
      %v992 = vadd.f32 %v943, %v991
      %993 = vmatmul.bf16.gmra.mxu0 %v285
      %v994 = vpop.f32.mrf.mxu0
      %v995 = vadd.f32 %v946, %v994
      %v996 = vpop.f32.mrf.mxu0
      %v997 = vadd.f32 %v948, %v996
      %998 = vmatmul.bf16.gmra.mxu0 %v287
      %v999 = vpop.f32.mrf.mxu0
      %v1000 = vadd.f32 %v951, %v999
      %v1001 = vpop.f32.mrf.mxu0
      %v1002 = vadd.f32 %v953, %v1001
      %1003 = vmatmul.bf16.gmra.mxu0 %v289
      %v1004 = vpop.f32.mrf.mxu0
      %v1005 = vadd.f32 %v956, %v1004
      %v1006 = vpop.f32.mrf.mxu0
      %v1007 = vadd.f32 %v958, %v1006
      %1008 = vmatmul.bf16.gmra.mxu0 %v291
      %v1009 = vpop.f32.mrf.mxu0
      %v1010 = vadd.f32 %v961, %v1009
      %v1011 = vpop.f32.mrf.mxu0
      %v1012 = vadd.f32 %v963, %v1011
      %1013 = vmatmul.bf16.gmra.mxu0 %v293
      %v1014 = vpop.f32.mrf.mxu0
      %v1015 = vadd.f32 %v966, %v1014
      %v1016 = vpop.f32.mrf.mxu0
      %v1017 = vadd.f32 %v968, %v1016
      %1018 = vmatmul.bf16.gmra.mxu0 %v295
      %v1019 = vpop.f32.mrf.mxu0
      %v1020 = vadd.f32 %v971, %v1019
      %v1021 = vpop.f32.mrf.mxu0
      %v1022 = vadd.f32 %v973, %v1021
      %1023 = vdwg.mxu0
      %v1024 = vpack.c.bf16 %v789, %v691
      %v1025 = vpack.c.bf16 %v985, %v887
      %v1026 = vpack.c.bf16 %v791, %v693
      %v1027 = vpack.c.bf16 %v987, %v889
      %v1028 = vpack.c.bf16 %v794, %v696
      %v1029 = vpack.c.bf16 %v990, %v892
      %v1030 = vpack.c.bf16 %v796, %v698
      %v1031 = vpack.c.bf16 %v992, %v894
      %v1032 = vpack.c.bf16 %v799, %v701
      %v1033 = vpack.c.bf16 %v995, %v897
      %v1034 = vpack.c.bf16 %v801, %v703
      %v1035 = vpack.c.bf16 %v997, %v899
      %v1036 = vpack.c.bf16 %v804, %v706
      %v1037 = vpack.c.bf16 %v1000, %v902
      %v1038 = vpack.c.bf16 %v806, %v708
      %v1039 = vpack.c.bf16 %v1002, %v904
      %v1040 = vpack.c.bf16 %v809, %v711
      %v1041 = vpack.c.bf16 %v1005, %v907
      %v1042 = vpack.c.bf16 %v811, %v713
      %v1043 = vpack.c.bf16 %v1007, %v909
      %v1044 = vpack.c.bf16 %v814, %v716
      %v1045 = vpack.c.bf16 %v1010, %v912
      %v1046 = vpack.c.bf16 %v816, %v718
      %v1047 = vpack.c.bf16 %v1012, %v914
      %v1048 = vpack.c.bf16 %v819, %v721
      %v1049 = vpack.c.bf16 %v1015, %v917
      %v1050 = vpack.c.bf16 %v821, %v723
      %v1051 = vpack.c.bf16 %v1017, %v919
      %v1052 = vpack.c.bf16 %v824, %v726
      %v1053 = vpack.c.bf16 %v1020, %v922
      %v1054 = vpack.c.bf16 %v826, %v728
      %v1055 = vpack.c.bf16 %v1022, %v924
      %1056 = vst [vmem:[%s150] sm:$0xff] %v1024
      %1057 = vst [vmem:[%s150 + $0x8] sm:$0xff] %v1025
      %1058 = vst [vmem:[%s150 + $0x10] sm:$0xff] %v1026
      %1059 = vst [vmem:[%s150 + $0x18] sm:$0xff] %v1027
      %1060 = vst [vmem:[%s150 + $0x20] sm:$0xff] %v1028
      %1061 = vst [vmem:[%s150 + $0x28] sm:$0xff] %v1029
      %1062 = vst [vmem:[%s150 + $0x30] sm:$0xff] %v1030
      %1063 = vst [vmem:[%s150 + $0x38] sm:$0xff] %v1031
      %1064 = vst [vmem:[%s150 + $0x40] sm:$0xff] %v1032
      %1065 = vst [vmem:[%s150 + $0x48] sm:$0xff] %v1033
      %1066 = vst [vmem:[%s150 + $0x50] sm:$0xff] %v1034
      %1067 = vst [vmem:[%s150 + $0x58] sm:$0xff] %v1035
      %1068 = vst [vmem:[%s150 + $0x60] sm:$0xff] %v1036
      %1069 = vst [vmem:[%s150 + $0x68] sm:$0xff] %v1037
      %1070 = vst [vmem:[%s150 + $0x70] sm:$0xff] %v1038
      %1071 = vst [vmem:[%s150 + $0x78] sm:$0xff] %v1039
      %1072 = vst [vmem:[%s150 + $0x80] sm:$0xff] %v1040
      %1073 = vst [vmem:[%s150 + $0x88] sm:$0xff] %v1041
      %1074 = vst [vmem:[%s150 + $0x90] sm:$0xff] %v1042
      %1075 = vst [vmem:[%s150 + $0x98] sm:$0xff] %v1043
      %1076 = vst [vmem:[%s150 + $0xa0] sm:$0xff] %v1044
      %1077 = vst [vmem:[%s150 + $0xa8] sm:$0xff] %v1045
      %1078 = vst [vmem:[%s150 + $0xb0] sm:$0xff] %v1046
      %1079 = vst [vmem:[%s150 + $0xb8] sm:$0xff] %v1047
      %1080 = vst [vmem:[%s150 + $0xc0] sm:$0xff] %v1048
      %1081 = vst [vmem:[%s150 + $0xc8] sm:$0xff] %v1049
      %1082 = vst [vmem:[%s150 + $0xd0] sm:$0xff] %v1050
      %1083 = vst [vmem:[%s150 + $0xd8] sm:$0xff] %v1051
      %1084 = vst [vmem:[%s150 + $0xe0] sm:$0xff] %v1052
      %1085 = vst [vmem:[%s150 + $0xe8] sm:$0xff] %v1053
      %1086 = vst [vmem:[%s150 + $0xf0] sm:$0xff] %v1054
      %1087 = vst [vmem:[%s150 + $0xf8] sm:$0xff] %v1055
      %s1088 = smul.u32 16, %s13
      %p1089 = scmp.lt.s32.totalorder %s1088, 31
      %s1090 = scalar_select %p1089, %s1088, 31
      %s1091 = smul.addr %s1090, 4
      %s1092 = smul.addr %s1091, 4
      %s1093 = scalar_lea.vmem %s2, %s1092
      // Predicated region
      $region29: #{self_attn_forward.2} parent=27 // pred_check
        %p1094 = pneg %p78
      $region30: #{self_attn_forward.2} parent=27 // pred_check_branch
        %1096 = sbr.rel (%p1094) target = $region32
      $region31: #{self_attn_forward.2} parent=27 // pred_region
        %s1097 = smul.u32 16, %s13
      $region32: #{self_attn_forward.2} parent=27 // pred_fallthru
        _
    $region28: #{self_attn_forward.2} parent=5 // pred_fallthru
      _
    %p1098 = scmp.le.s32.totalorder 2, %s8
    // Predicated region
    $region33: #{self_attn_forward.2} parent=5 // pred_check
      %p1099 = pneg %p1098
    $region34: #{self_attn_forward.2} parent=5 // pred_check_branch
      %1101 = sbr.rel (%p1099) target = $region36
    $region35: #{self_attn_forward.2} parent=5 // pred_region
      %s1102 = ssub.s32 %s8, 2
      // Predicated region
      $region37: #{self_attn_forward.2} parent=35 // pred_check
        %p1103 = pneg %p84
      $region38: #{self_attn_forward.2} parent=35 // pred_check_branch
        %1105 = sbr.rel (%p1103) target = $region40
      $region39: #{self_attn_forward.2} parent=35 // pred_region
        %s1106 = smul.u32 16, %s14
        %p1107 = scmp.lt.s32.totalorder %s1106, 31
        %s1108 = scalar_select %p1107, %s1106, 31
        %s1109 = smul.addr %s1108, 4
        %s1110 = smul.addr %s1109, 4
        %s1111 = scalar_lea.vmem %s2, %s1110
      $region40: #{self_attn_forward.2} parent=35 // pred_fallthru
        _
    $region36: #{self_attn_forward.2} parent=5 // pred_fallthru
      _
  $region6: #{self_attn_forward.2} parent=0 // loop_footer
    %s12 = sadd.s32 1, %s8
  $region7: #{self_attn_forward.2} parent=0 // loop_footer_branch
    %7 = sbr.rel target = $region3
  $region8: #{self_attn_forward.2} parent=0 // loop_exit
    _

// kernel: self_attn_forward.3
$region0: #{self_attn_forward.3}
  #allocation0 [shape = 'u32[]', space=smem, size = 0x4, offset = 0x4, fixed_abs, tag = 'smem constant byte address 0x4 - core index']
  #allocation1 [shape = 'u32[72,128]{1,0:T(1,128)}', space=vmem, size = 0x9000, scoped, tag = 'internal scratch']
  %s0 = inlined_call_operand.vmem [shape: bf16[2,128,128], index: 0, kind: input, shape index: {}]
  %s1 = inlined_call_operand.vmem [shape: bf16[2,25,128], index: 1, kind: input, shape index: {}]
  %s2 = inlined_call_operand.vmem [shape: bf16[2,25,256], index: 2, kind: input, shape index: {}]
  %s3 = inlined_call_operand.vmem [shape: f32[2,256,128], index: 3, kind: output, shape index: {}]
  %s4 = sld [smem:[#allocation0]]
  $region45: #{self_attn_forward.3} parent=0
    _
  %s6 = ssub.s32 1, %s4
  %s7 = scalar_select 0, %s6, %s4
  loop: start=0, step=1, limit=4
  $region2: #{self_attn_forward.3} parent=0 // loop_pre_header
    _
  $region3: #{self_attn_forward.3} parent=0 // loop_header
    %s9 = sphi 0, %s13
    %p10 = scmp.ge.s32.totalorder %s9, 4
    %s16 = sphi 0, %s28
    %s17 = sphi 0, %s24
    %s18 = sphi 0, %s16
    %s19 = sphi 0, %s17
    %s20 = sphi 0, %s18
    %s21 = sphi 0, %s19
    %s33 = sphi 0, %s35
    %s36 = sphi 0, %s33
    %s37 = sphi 0, %s36
    %s53 = sphi 0, %s37
    %s59 = sphi 0, %s61
    %s62 = sphi 0, %s59
    %s63 = sphi 0, %s62
    %s79 = sphi 0, %s63
    %s85 = sphi 0, %s87
    %s88 = sphi 0, %s85
    %s89 = sphi 0, %s88
    %s105 = sphi 0, %s89
    %s113 = sphi 0, %s115
    %s116 = sphi 0, %s113
    %s117 = sphi 0, %s116
    %s133 = sphi 0, %s117
  $region4: #{self_attn_forward.3} parent=0 // loop_header_branch
    %12 = sbr.rel (%p10) target = $region8
  $region5: #{self_attn_forward.3} parent=0 // loop_body
    %s14 = ssub.s32 %s9, 1
    %s15 = ssub.s32 %s9, 2
    %s22 = sadd.s32 1, %s17
    %p23 = scmp.ge.s32.totalorder %s22, 1
    %s24 = scalar_select %p23, 0, %s22
    %s25 = sadd.s32 1, %s16
    %s26 = scalar_select %p23, %s25, %s16
    %p27 = scmp.ge.s32.totalorder %s26, 2
    %s28 = scalar_select %p27, 0, %s26
    %s29 = ssub.s32 %s16, %s28
    %s30 = ssub.s32 %s17, %s24
    %s31 = sor.u32 %s29, %s30
    %p32 = scmp.eq.s32.totalorder %s31, 0
    %s34 = sadd.s32 %s33, 1
    %s35 = scalar_select %p32, %s33, %s34
    %p38 = pneg %p32
    %p39 = scmp.eq.s32.totalorder %s9, 1
    %p40 = por %p38, %p39
    %p41 = scmp.ne.s32.totalorder %s33, %s36
    %p42 = scmp.eq.s32.totalorder %s9, 0
    %p43 = por %p41, %p42
    %p44 = scmp.ne.s32.totalorder %s33, %s36
    %p45 = scmp.eq.s32.totalorder %s14, 1
    %p46 = por %p44, %p45
    %p47 = scmp.ne.s32.totalorder %s36, %s37
    %p48 = scmp.eq.s32.totalorder %s14, 0
    %p49 = por %p47, %p48
    %p50 = scmp.ne.s32.totalorder %s36, %s37
    %p51 = scmp.eq.s32.totalorder %s15, 1
    %p52 = por %p50, %p51
    %p54 = scmp.ne.s32.totalorder %s37, %s53
    %p55 = scmp.eq.s32.totalorder %s15, 0
    %p56 = por %p54, %p55
    %s57 = ssub.s32 %s16, %s28
    %p58 = scmp.eq.s32.totalorder %s57, 0
    %s60 = sadd.s32 %s59, 1
    %s61 = scalar_select %p58, %s59, %s60
    %p64 = pneg %p58
    %p65 = scmp.eq.s32.totalorder %s9, 1
    %p66 = por %p64, %p65
    %p67 = scmp.ne.s32.totalorder %s59, %s62
    %p68 = scmp.eq.s32.totalorder %s9, 0
    %p69 = por %p67, %p68
    %p70 = scmp.ne.s32.totalorder %s59, %s62
    %p71 = scmp.eq.s32.totalorder %s14, 1
    %p72 = por %p70, %p71
    %p73 = scmp.ne.s32.totalorder %s62, %s63
    %p74 = scmp.eq.s32.totalorder %s14, 0
    %p75 = por %p73, %p74
    %p76 = scmp.ne.s32.totalorder %s62, %s63
    %p77 = scmp.eq.s32.totalorder %s15, 1
    %p78 = por %p76, %p77
    %p80 = scmp.ne.s32.totalorder %s63, %s79
    %p81 = scmp.eq.s32.totalorder %s15, 0
    %p82 = por %p80, %p81
    %s83 = ssub.s32 %s16, %s28
    %p84 = scmp.eq.s32.totalorder %s83, 0
    %s86 = sadd.s32 %s85, 1
    %s87 = scalar_select %p84, %s85, %s86
    %p90 = pneg %p84
    %p91 = scmp.eq.s32.totalorder %s9, 1
    %p92 = por %p90, %p91
    %p93 = scmp.ne.s32.totalorder %s85, %s88
    %p94 = scmp.eq.s32.totalorder %s9, 0
    %p95 = por %p93, %p94
    %p96 = scmp.ne.s32.totalorder %s85, %s88
    %p97 = scmp.eq.s32.totalorder %s14, 1
    %p98 = por %p96, %p97
    %p99 = scmp.ne.s32.totalorder %s88, %s89
    %p100 = scmp.eq.s32.totalorder %s14, 0
    %p101 = por %p99, %p100
    %p102 = scmp.ne.s32.totalorder %s88, %s89
    %p103 = scmp.eq.s32.totalorder %s15, 1
    %p104 = por %p102, %p103
    %p106 = scmp.ne.s32.totalorder %s89, %s105
    %p107 = scmp.eq.s32.totalorder %s15, 0
    %p108 = por %p106, %p107
    %s109 = ssub.s32 %s16, %s28
    %s110 = ssub.s32 %s17, %s24
    %s111 = sor.u32 %s109, %s110
    %p112 = scmp.eq.s32.totalorder %s111, 0
    %s114 = sadd.s32 %s113, 1
    %s115 = scalar_select %p112, %s113, %s114
    %p118 = pneg %p112
    %p119 = scmp.eq.s32.totalorder %s9, 1
    %p120 = por %p118, %p119
    %p121 = scmp.ne.s32.totalorder %s113, %s116
    %p122 = scmp.eq.s32.totalorder %s9, 0
    %p123 = por %p121, %p122
    %p124 = scmp.ne.s32.totalorder %s113, %s116
    %p125 = scmp.eq.s32.totalorder %s14, 1
    %p126 = por %p124, %p125
    %p127 = scmp.ne.s32.totalorder %s116, %s117
    %p128 = scmp.eq.s32.totalorder %s14, 0
    %p129 = por %p127, %p128
    %p130 = scmp.ne.s32.totalorder %s116, %s117
    %p131 = scmp.eq.s32.totalorder %s15, 1
    %p132 = por %p130, %p131
    %p134 = scmp.ne.s32.totalorder %s117, %s133
    %p135 = scmp.eq.s32.totalorder %s15, 0
    %p136 = por %p134, %p135
    %p137 = scmp.le.s32.totalorder 1, %s9
    %p138 = scmp.lt.s32.totalorder %s9, 3
    %p139 = pnand %p137, %p138
    %p140 = pneg %p139
    // Predicated region
    $region9: #{self_attn_forward.3} parent=5 // pred_check
      _
    $region10: #{self_attn_forward.3} parent=5 // pred_check_branch
      %142 = sbr.rel (%p139) target = $region12
    $region11: #{self_attn_forward.3} parent=5 // pred_region
      %s143 = ssub.s32 %s9, 1
    $region12: #{self_attn_forward.3} parent=5 // pred_fallthru
      _
    %p144 = scmp.lt.s32.totalorder %s9, 2
    // Predicated region
    $region13: #{self_attn_forward.3} parent=5 // pred_check
      %p145 = pneg %p144
    $region14: #{self_attn_forward.3} parent=5 // pred_check_branch
      %147 = sbr.rel (%p145) target = $region16
    $region15: #{self_attn_forward.3} parent=5 // pred_region
      // Predicated region
      $region17: #{self_attn_forward.3} parent=15 // pred_check
        %p148 = pneg %p43
      $region18: #{self_attn_forward.3} parent=15 // pred_check_branch
        %150 = sbr.rel (%p148) target = $region20
      $region19: #{self_attn_forward.3} parent=15 // pred_region
        %s151 = smul.u32 16, %s17
        %p152 = scmp.lt.s32.totalorder %s16, 1
        %s153 = scalar_select %p152, %s16, 1
        %p154 = scmp.lt.s32.totalorder %s151, 15
        %s155 = scalar_select %p154, %s151, 15
        %s156 = smul.addr %s153, 16
        %s157 = sadd.s32 %s155, %s156
        %s158 = smul.addr %s157, 4
        %s159 = scalar_lea.vmem %s0, %s158
        %s160 = smul.u32 16, %s17
      $region20: #{self_attn_forward.3} parent=15 // pred_fallthru
        _
      // Predicated region
      $region21: #{self_attn_forward.3} parent=15 // pred_check
        %p161 = pneg %p69
      $region22: #{self_attn_forward.3} parent=15 // pred_check_branch
        %163 = sbr.rel (%p161) target = $region24
      $region23: #{self_attn_forward.3} parent=15 // pred_region
        %p164 = scmp.lt.s32.totalorder %s16, 1
        %s165 = scalar_select %p164, %s16, 1
        %s166 = smul.addr %s165, 4
        %s167 = smul.addr %s166, 4
        %s168 = scalar_lea.vmem %s1, %s167
      $region24: #{self_attn_forward.3} parent=15 // pred_fallthru
        _
      // Predicated region
      $region25: #{self_attn_forward.3} parent=15 // pred_check
        %p169 = pneg %p95
      $region26: #{self_attn_forward.3} parent=15 // pred_check_branch
        %171 = sbr.rel (%p169) target = $region28
      $region27: #{self_attn_forward.3} parent=15 // pred_region
        %p172 = scmp.lt.s32.totalorder %s16, 1
        %s173 = scalar_select %p172, %s16, 1
        %s174 = smul.addr %s173, 8
        %s175 = smul.addr %s174, 4
        %s176 = scalar_lea.vmem %s2, %s175
      $region28: #{self_attn_forward.3} parent=15 // pred_fallthru
        _
    $region16: #{self_attn_forward.3} parent=5 // pred_fallthru
      _
    %p177 = scmp.le.s32.totalorder 1, %s9
    %p178 = scmp.lt.s32.totalorder %s9, 3
    %p179 = pnand %p177, %p178
    %p180 = pneg %p179
    // Predicated region
    $region29: #{self_attn_forward.3} parent=5 // pred_check
      _
    $region30: #{self_attn_forward.3} parent=5 // pred_check_branch
      %182 = sbr.rel (%p179) target = $region32
    $region31: #{self_attn_forward.3} parent=5 // pred_region
      %s183 = ssub.s32 %s9, 1
      %s184 = smul.u32 16, %s19
      %p185 = scmp.lt.s32.totalorder %s18, 1
      %s186 = scalar_select %p185, %s18, 1
      %p187 = scmp.lt.s32.totalorder %s184, 15
      %s188 = scalar_select %p187, %s184, 15
      %s189 = smul.addr %s186, 16
      %s190 = sadd.s32 %s188, %s189
      %s191 = smul.addr %s190, 4
      %s192 = scalar_lea.vmem %s0, %s191
      %p193 = pneg %p49
      %p194 = pneg %p46
      %p195 = scmp.lt.s32.totalorder %s18, 1
      %s196 = scalar_select %p195, %s18, 1
      %s197 = smul.addr %s196, 4
      %s198 = smul.addr %s197, 4
      %s199 = scalar_lea.vmem %s1, %s198
      %p200 = pneg %p75
      %p201 = pneg %p72
      %p202 = scmp.lt.s32.totalorder %s18, 1
      %s203 = scalar_select %p202, %s18, 1
      %s204 = smul.addr %s203, 8
      %s205 = smul.addr %s204, 4
      %s206 = scalar_lea.vmem %s2, %s205
      %p207 = pneg %p101
      %p208 = pneg %p98
      %p209 = pneg %p129
      %p210 = pneg %p126
      %p211 = scmp.lt.s32.totalorder %s18, 1
      %s212 = scalar_select %p211, %s18, 1
      %p213 = scmp.lt.s32.totalorder %s19, 0
      %s214 = scalar_select %p213, %s19, 0
      %s215 = smul.addr %s212, 32
      %s216 = sadd.s32 %s214, %s215
      %s217 = smul.addr %s216, 8
      %s218 = scalar_lea.vmem %s3, %s217
      %s219 = smul.u32 16, %s19
      %p220 = scmp.lt.s32.totalorder %s18, 1
      %s221 = scalar_select %p220, %s18, 1
      %p222 = scmp.lt.s32.totalorder %s219, 15
      %s223 = scalar_select %p222, %s219, 15
      %s224 = smul.addr %s221, 16
      %s225 = sadd.s32 %s223, %s224
      %s226 = smul.addr %s225, 4
      %s227 = scalar_lea.vmem %s0, %s226
      %s228 = smul.u32 16, %s19
      %p229 = scmp.lt.s32.totalorder %s18, 1
      %s230 = scalar_select %p229, %s18, 1
      %s231 = smul.addr %s230, 4
      %s232 = smul.addr %s231, 4
      %s233 = scalar_lea.vmem %s1, %s232
      %p234 = scmp.lt.s32.totalorder %s18, 1
      %s235 = scalar_select %p234, %s18, 1
      %s236 = smul.addr %s235, 8
      %s237 = smul.addr %s236, 4
      %s238 = scalar_lea.vmem %s2, %s237
      %p239 = scmp.lt.s32.totalorder %s18, 1
      %s240 = scalar_select %p239, %s18, 1
      %p241 = scmp.lt.s32.totalorder %s19, 0
      %s242 = scalar_select %p241, %s19, 0
      %s243 = smul.addr %s240, 32
      %s244 = sadd.s32 %s242, %s243
      %s245 = smul.addr %s244, 8
      %s246 = scalar_lea.vmem %s3, %s245
      %v248 = vld [vmem:[%s227] sm:$0xf]
      %v249 = vld [vmem:[%s227 + $0x4] sm:$0xf]
      %v250 = vld [vmem:[%s227 + $0x8] sm:$0xf]
      %v251 = vld [vmem:[%s227 + $0xc] sm:$0xf]
      %v252 = vld [vmem:[%s227 + $0x10] sm:$0xf]
      %v253 = vld [vmem:[%s227 + $0x14] sm:$0xf]
      %v254 = vld [vmem:[%s227 + $0x18] sm:$0xf]
      %v255 = vld [vmem:[%s227 + $0x1c] sm:$0xf]
      %v256 = vld [vmem:[%s227 + $0x20] sm:$0xf]
      %v257 = vld [vmem:[%s227 + $0x24] sm:$0xf]
      %v258 = vld [vmem:[%s227 + $0x28] sm:$0xf]
      %v259 = vld [vmem:[%s227 + $0x2c] sm:$0xf]
      %v260 = vld [vmem:[%s227 + $0x30] sm:$0xf]
      %v261 = vld [vmem:[%s227 + $0x34] sm:$0xf]
      %v262 = vld [vmem:[%s227 + $0x38] sm:$0xf]
      %v263 = vld [vmem:[%s227 + $0x3c] sm:$0xf]
      %v264 = vld [vmem:[%s233] sm:$0xf]
      %v265 = vld [vmem:[%s233 + $0x4] sm:$0xf]
      %v266 = vld [vmem:[%s233 + $0x8] sm:$0xf]
      %v267 = vld [vmem:[%s233 + $0xc] sm:$0x1]
      %v268 = vld [vmem:[%s238] sm:$0xff]
      %v269 = vld [vmem:[%s238 + $0x8] sm:$0xff]
      %v270 = vld [vmem:[%s238 + $0x10] sm:$0xff]
      %v271 = vld [vmem:[%s238 + $0x18] sm:$0x11]
      %v276 = vunpack.c.l.b16 %v264
      %v277 = vunpack.c.l.b16 %v265
      %v278 = vunpack.c.l.b16 %v266
      %v279 = vunpack.c.l.b16 %v267
      %v280 = vpack.c.b16 %v277, %v276
      %v281 = vpack.c.b16 %v279, %v278
      %v300 = vunpack.c.l.b16 %v248
      %v301 = vunpack.c.l.b16 %v249
      %v302 = vunpack.c.l.b16 %v250
      %v303 = vunpack.c.l.b16 %v251
      %v304 = vunpack.c.l.b16 %v252
      %v305 = vunpack.c.l.b16 %v253
      %v306 = vunpack.c.l.b16 %v254
      %v307 = vunpack.c.l.b16 %v255
      %v308 = vunpack.c.l.b16 %v256
      %v309 = vunpack.c.l.b16 %v257
      %v310 = vunpack.c.l.b16 %v258
      %v311 = vunpack.c.l.b16 %v259
      %v312 = vunpack.c.l.b16 %v260
      %v313 = vunpack.c.l.b16 %v261
      %v314 = vunpack.c.l.b16 %v262
      %v315 = vunpack.c.l.b16 %v263
      %v316 = vpack.c.b16 %v301, %v300
      %v317 = vpack.c.b16 %v303, %v302
      %v318 = vpack.c.b16 %v305, %v304
      %v319 = vpack.c.b16 %v307, %v306
      %v320 = vpack.c.b16 %v309, %v308
      %v321 = vpack.c.b16 %v311, %v310
      %v322 = vpack.c.b16 %v313, %v312
      %v323 = vpack.c.b16 %v315, %v314
      %332 = vmatpush.bf16.xpose.msra.mxu0 %v323
      %333 = vmatpush.bf16.xpose.msra.mxu0 %v322
      %334 = vmatpush.bf16.xpose.msra.mxu0 %v321
      %335 = vmatpush.bf16.xpose.msra.mxu0 %v320
      %336 = vmatpush.bf16.xpose.msra.mxu0 %v319
      %337 = vmatpush.bf16.xpose.msra.mxu0 %v318
      %338 = vmatpush.bf16.xpose.msra.mxu0 %v317
      %339 = vmatpush.bf16.xpose.msra.mxu0 %v316
      %340 = vmatmul.bf16.gmra.mxu0 %v280
      %v341 = vpop.f32.mrf.mxu0
      %v342 = vadd.f32 0.0, %v341
      %v343 = vpop.f32.mrf.mxu0
      %v344 = vadd.f32 0.0, %v343
      %345 = vmatmul.bf16.gmra.mxu0 %v281
      %v346 = vpop.f32.mrf.mxu0
      %v347 = vadd.f32 0.0, %v346
      %v348 = vpop.f32.mrf.mxu0
      %v349 = vadd.f32 0.0, %v348
      %350 = vdwg.mxu0
      %vm351 = vcmask 1040384
      %v352 = vsel %vm351, %v349, -inf
      %v353 = vmax.f32 %v342, %v344
      %v354 = vmax.f32 %v347, %v352
      %v355 = vmax.f32 %v353, %v354
      %v356 = vrot.slane %v355, 4
      %v357 = vmax.f32 %v355, %v356
      %v358 = vrot.slane %v357, 2
      %v359 = vmax.f32 %v357, %v358
      %v360 = vrot.slane %v359, 1
      %v361 = vmax.f32 %v359, %v360
      %v362 = vsub.f32 %v342, %v361
      %v363 = vsub.f32 %v344, %v361
      %v364 = vsub.f32 %v347, %v361
      %v365 = vsub.f32 %v349, %v361
      %v366 = vmul.f32 %v362, 1.442695
      %v367 = vpow.pop %v366
      %v368 = vmul.f32 %v363, 1.442695
      %v369 = vpow.pop %v368
      %v370 = vmul.f32 %v364, 1.442695
      %v371 = vpow.pop %v370
      %v372 = vmul.f32 %v365, 1.442695
      %v373 = vpow.pop %v372
      %v374 = vadd.f32 %v367, %v369
      %v375 = vadd.f32 %v374, %v371
      %v376 = vsel %vm351, %v373, 0.0
      %v377 = vadd.f32 %v375, %v376
      %v378 = vrot.slane %v377, 4
      %v379 = vadd.f32 %v377, %v378
      %v380 = vrot.slane %v379, 2
      %v381 = vadd.f32 %v379, %v380
      %v382 = vrot.slane %v381, 1
      %v383 = vadd.f32 %v381, %v382
      %v384 = vrcp.pop %v383
      %v385 = vmul.f32 %v367, %v384
      %v386 = vmul.f32 %v369, %v384
      %v387 = vmul.f32 %v371, %v384
      %v388 = vmul.f32 %v373, %v384
      %v389 = vpack.c.bf16 %v386, %v385
      %v390 = vpack.c.bf16 %v388, %v387
      %v395 = vunpack.c.l.b16 %v268
      %v396 = vunpack.c.h.b16 %v268
      %v397 = vunpack.c.l.b16 %v269
      %v398 = vunpack.c.h.b16 %v269
      %v399 = vunpack.c.l.b16 %v270
      %v400 = vunpack.c.h.b16 %v270
      %v401 = vunpack.c.l.b16 %v271
      %v402 = vunpack.c.h.b16 %v271
      %v403 = vpack.c.b16 %v397, %v395
      %v404 = vpack.c.b16 %v398, %v396
      %v405 = vpack.c.b16 %v401, %v399
      %v406 = vpack.c.b16 %v402, %v400
      %411 = vxpose.binary.xlu0.c.b16.start [1/16] %v404, %v403, 128
      %412 = vxpose.binary.xlu0.c.b16.cont [2/16] %v406, %v405, 128
      %413 = vxpose.binary.xlu0.c.b16.cont [3/16] 0, 0, 128
      %414 = vxpose.binary.xlu0.c.b16.cont [4/16] 0, 0, 128
      %415 = vxpose.binary.xlu0.c.b16.cont [5/16] 0, 0, 128
      %416 = vxpose.binary.xlu0.c.b16.cont [6/16] 0, 0, 128
      %417 = vxpose.binary.xlu0.c.b16.cont [7/16] 0, 0, 128
      %418 = vxpose.binary.xlu0.c.b16.end [8/16] 0, 0, 128
      %v419 = vpop.trf.xlu0
      %v420 = vpop.trf.xlu0
      %v421 = vpop.trf.xlu0
      %v422 = vpop.trf.xlu0
      %v423 = vpop.trf.xlu0
      %v424 = vpop.trf.xlu0
      %v425 = vpop.trf.xlu0
      %v426 = vpop.trf.xlu0
      %v427 = vpop.trf.xlu0
      %v428 = vpop.trf.xlu0
      %v429 = vpop.trf.xlu0
      %v430 = vpop.trf.xlu0
      %v431 = vpop.trf.xlu0
      %v432 = vpop.trf.xlu0
      %v433 = vpop.trf.xlu0
      %v434 = vpop.trf.xlu0
      %vm435 = vcmask 203776
      %v437 = vsel %vm435, %v419, 0
      %v440 = vsel %vm435, %v421, 0
      %v443 = vsel %vm435, %v423, 0
      %v446 = vsel %vm435, %v425, 0
      %v449 = vsel %vm435, %v427, 0
      %v452 = vsel %vm435, %v429, 0
      %v455 = vsel %vm435, %v431, 0
      %v458 = vsel %vm435, %v433, 0
      %v461 = vsel %vm435, %v420, 0
      %v464 = vsel %vm435, %v422, 0
      %v467 = vsel %vm435, %v424, 0
      %v470 = vsel %vm435, %v426, 0
      %v473 = vsel %vm435, %v428, 0
      %v476 = vsel %vm435, %v430, 0
      %v479 = vsel %vm435, %v432, 0
      %v482 = vsel %vm435, %v434, 0
      %vm484 = vcmask 1043456
      %vm485 = vcmask 1044480
      %v486 = vsel %vm484, 4294967295, 65535
      %v487 = vsel %vm485, %v486, 0
      %v489 = vand.u32 %v390, %v487
      %491 = vmatpush.bf16.msra.mxu0 0
      %492 = vmatpush.bf16.msra.mxu0 0
      %493 = vmatpush.bf16.msra.mxu0 0
      %494 = vmatpush.bf16.msra.mxu0 0
      %495 = vmatpush.bf16.msra.mxu0 0
      %496 = vmatpush.bf16.msra.mxu0 0
      %497 = vmatpush.bf16.msra.mxu0 %v489
      %498 = vmatpush.bf16.msra.mxu0 %v389
      %499 = vmatmul.bf16.gmra.mxu0 %v437
      %v500 = vpop.f32.mrf.mxu0
      %v501 = vadd.f32 0.0, %v500
      %v502 = vpop.f32.mrf.mxu0
      %v503 = vadd.f32 0.0, %v502
      %504 = vmatmul.bf16.gmra.mxu0 %v440
      %v505 = vpop.f32.mrf.mxu0
      %v506 = vadd.f32 0.0, %v505
      %v507 = vpop.f32.mrf.mxu0
      %v508 = vadd.f32 0.0, %v507
      %509 = vmatmul.bf16.gmra.mxu0 %v443
      %v510 = vpop.f32.mrf.mxu0
      %v511 = vadd.f32 0.0, %v510
      %v512 = vpop.f32.mrf.mxu0
      %v513 = vadd.f32 0.0, %v512
      %514 = vmatmul.bf16.gmra.mxu0 %v446
      %v515 = vpop.f32.mrf.mxu0
      %v516 = vadd.f32 0.0, %v515
      %v517 = vpop.f32.mrf.mxu0
      %v518 = vadd.f32 0.0, %v517
      %519 = vmatmul.bf16.gmra.mxu0 %v449
      %v520 = vpop.f32.mrf.mxu0
      %v521 = vadd.f32 0.0, %v520
      %v522 = vpop.f32.mrf.mxu0
      %v523 = vadd.f32 0.0, %v522
      %524 = vmatmul.bf16.gmra.mxu0 %v452
      %v525 = vpop.f32.mrf.mxu0
      %v526 = vadd.f32 0.0, %v525
      %v527 = vpop.f32.mrf.mxu0
      %v528 = vadd.f32 0.0, %v527
      %529 = vmatmul.bf16.gmra.mxu0 %v455
      %v530 = vpop.f32.mrf.mxu0
      %v531 = vadd.f32 0.0, %v530
      %v532 = vpop.f32.mrf.mxu0
      %v533 = vadd.f32 0.0, %v532
      %534 = vmatmul.bf16.gmra.mxu0 %v458
      %v535 = vpop.f32.mrf.mxu0
      %v536 = vadd.f32 0.0, %v535
      %v537 = vpop.f32.mrf.mxu0
      %v538 = vadd.f32 0.0, %v537
      %539 = vmatmul.bf16.gmra.mxu0 %v461
      %v540 = vpop.f32.mrf.mxu0
      %v541 = vadd.f32 0.0, %v540
      %v542 = vpop.f32.mrf.mxu0
      %v543 = vadd.f32 0.0, %v542
      %544 = vmatmul.bf16.gmra.mxu0 %v464
      %v545 = vpop.f32.mrf.mxu0
      %v546 = vadd.f32 0.0, %v545
      %v547 = vpop.f32.mrf.mxu0
      %v548 = vadd.f32 0.0, %v547
      %549 = vmatmul.bf16.gmra.mxu0 %v467
      %v550 = vpop.f32.mrf.mxu0
      %v551 = vadd.f32 0.0, %v550
      %v552 = vpop.f32.mrf.mxu0
      %v553 = vadd.f32 0.0, %v552
      %554 = vmatmul.bf16.gmra.mxu0 %v470
      %v555 = vpop.f32.mrf.mxu0
      %v556 = vadd.f32 0.0, %v555
      %v557 = vpop.f32.mrf.mxu0
      %v558 = vadd.f32 0.0, %v557
      %559 = vmatmul.bf16.gmra.mxu0 %v473
      %v560 = vpop.f32.mrf.mxu0
      %v561 = vadd.f32 0.0, %v560
      %v562 = vpop.f32.mrf.mxu0
      %v563 = vadd.f32 0.0, %v562
      %564 = vmatmul.bf16.gmra.mxu0 %v476
      %v565 = vpop.f32.mrf.mxu0
      %v566 = vadd.f32 0.0, %v565
      %v567 = vpop.f32.mrf.mxu0
      %v568 = vadd.f32 0.0, %v567
      %569 = vmatmul.bf16.gmra.mxu0 %v479
      %v570 = vpop.f32.mrf.mxu0
      %v571 = vadd.f32 0.0, %v570
      %v572 = vpop.f32.mrf.mxu0
      %v573 = vadd.f32 0.0, %v572
      %574 = vmatmul.bf16.gmra.mxu0 %v482
      %v575 = vpop.f32.mrf.mxu0
      %v576 = vadd.f32 0.0, %v575
      %v577 = vpop.f32.mrf.mxu0
      %v578 = vadd.f32 0.0, %v577
      %579 = vdwg.mxu0
      %580 = vst [vmem:[%s246] sm:$0xff] %v501
      %581 = vst [vmem:[%s246 + $0x8] sm:$0xff] %v503
      %582 = vst [vmem:[%s246 + $0x10] sm:$0xff] %v506
      %583 = vst [vmem:[%s246 + $0x18] sm:$0xff] %v508
      %584 = vst [vmem:[%s246 + $0x20] sm:$0xff] %v511
      %585 = vst [vmem:[%s246 + $0x28] sm:$0xff] %v513
      %586 = vst [vmem:[%s246 + $0x30] sm:$0xff] %v516
      %587 = vst [vmem:[%s246 + $0x38] sm:$0xff] %v518
      %588 = vst [vmem:[%s246 + $0x40] sm:$0xff] %v521
      %589 = vst [vmem:[%s246 + $0x48] sm:$0xff] %v523
      %590 = vst [vmem:[%s246 + $0x50] sm:$0xff] %v526
      %591 = vst [vmem:[%s246 + $0x58] sm:$0xff] %v528
      %592 = vst [vmem:[%s246 + $0x60] sm:$0xff] %v531
      %593 = vst [vmem:[%s246 + $0x68] sm:$0xff] %v533
      %594 = vst [vmem:[%s246 + $0x70] sm:$0xff] %v536
      %595 = vst [vmem:[%s246 + $0x78] sm:$0xff] %v538
      %596 = vst [vmem:[%s246 + $0x80] sm:$0xff] %v541
      %597 = vst [vmem:[%s246 + $0x88] sm:$0xff] %v543
      %598 = vst [vmem:[%s246 + $0x90] sm:$0xff] %v546
      %599 = vst [vmem:[%s246 + $0x98] sm:$0xff] %v548
      %600 = vst [vmem:[%s246 + $0xa0] sm:$0xff] %v551
      %601 = vst [vmem:[%s246 + $0xa8] sm:$0xff] %v553
      %602 = vst [vmem:[%s246 + $0xb0] sm:$0xff] %v556
      %603 = vst [vmem:[%s246 + $0xb8] sm:$0xff] %v558
      %604 = vst [vmem:[%s246 + $0xc0] sm:$0xff] %v561
      %605 = vst [vmem:[%s246 + $0xc8] sm:$0xff] %v563
      %606 = vst [vmem:[%s246 + $0xd0] sm:$0xff] %v566
      %607 = vst [vmem:[%s246 + $0xd8] sm:$0xff] %v568
      %608 = vst [vmem:[%s246 + $0xe0] sm:$0xff] %v571
      %609 = vst [vmem:[%s246 + $0xe8] sm:$0xff] %v573
      %610 = vst [vmem:[%s246 + $0xf0] sm:$0xff] %v576
      %611 = vst [vmem:[%s246 + $0xf8] sm:$0xff] %v578
      %p612 = scmp.lt.s32.totalorder %s18, 1
      %s613 = scalar_select %p612, %s18, 1
      %p614 = scmp.lt.s32.totalorder %s19, 0
      %s615 = scalar_select %p614, %s19, 0
      %s616 = smul.addr %s613, 32
      %s617 = sadd.s32 %s615, %s616
      %s618 = smul.addr %s617, 8
      %s619 = scalar_lea.vmem %s3, %s618
      // Predicated region
      $region33: #{self_attn_forward.3} parent=31 // pred_check
        %p620 = pneg %p126
      $region34: #{self_attn_forward.3} parent=31 // pred_check_branch
        %622 = sbr.rel (%p620) target = $region36
      $region35: #{self_attn_forward.3} parent=31 // pred_region
        _
      $region36: #{self_attn_forward.3} parent=31 // pred_fallthru
        _
    $region32: #{self_attn_forward.3} parent=5 // pred_fallthru
      _
    %p623 = scmp.le.s32.totalorder 2, %s9
    // Predicated region
    $region37: #{self_attn_forward.3} parent=5 // pred_check
      %p624 = pneg %p623
    $region38: #{self_attn_forward.3} parent=5 // pred_check_branch
      %626 = sbr.rel (%p624) target = $region40
    $region39: #{self_attn_forward.3} parent=5 // pred_region
      %s627 = ssub.s32 %s9, 2
      // Predicated region
      $region41: #{self_attn_forward.3} parent=39 // pred_check
        %p628 = pneg %p132
      $region42: #{self_attn_forward.3} parent=39 // pred_check_branch
        %630 = sbr.rel (%p628) target = $region44
      $region43: #{self_attn_forward.3} parent=39 // pred_region
        %p631 = scmp.lt.s32.totalorder %s20, 1
        %s632 = scalar_select %p631, %s20, 1
        %p633 = scmp.lt.s32.totalorder %s21, 0
        %s634 = scalar_select %p633, %s21, 0
        %s635 = smul.addr %s632, 32
        %s636 = sadd.s32 %s634, %s635
        %s637 = smul.addr %s636, 8
        %s638 = scalar_lea.vmem %s3, %s637
      $region44: #{self_attn_forward.3} parent=39 // pred_fallthru
        _
    $region40: #{self_attn_forward.3} parent=5 // pred_fallthru
      _
  $region6: #{self_attn_forward.3} parent=0 // loop_footer
    %s13 = sadd.s32 1, %s9
  $region7: #{self_attn_forward.3} parent=0 // loop_footer_branch
    %8 = sbr.rel target = $region3
  $region8: #{self_attn_forward.3} parent=0 // loop_exit
    _

</llo_original>
